<compile_context>
chip_gen: v5e
topology: v5e:2x2
jax: 0.10.0
libtpu: 0.0.40
codegen_flags: <defaults>
</compile_context>

<pallas_src>
import functools
import numpy as np
import jax
import jax.numpy as jnp
from jax.experimental import pallas as pl
from jax.experimental.pallas import tpu as pltpu

_LABEL2MASK_THRESHOL = 500  # constant used by the reference label2bbx


# ----------------------------------------------------------------------------
# Tiling helper
# ----------------------------------------------------------------------------

def _pixel_tile(P, max_tile=512):
    """Largest lane-dense pixel tile: full extent if small, else a multiple of 128."""
    if P <= max_tile:
        return P  # full-extent block is always legal
    start = max_tile - (max_tile % 128)
    for t in range(start, 0, -128):
        if P % t == 0:
            return t
    # Non-divisible: 128-multiple tile with a cdiv grid; Pallas masks the tail.
    return min(512, start)


# ----------------------------------------------------------------------------
# Fused segmentation head:
#   convf2+relu (recomputed per tile) -> Kron bilinear upsample ->
#   convf1+relu + add -> conv_f_res -> exact channel softmax.
# Channels live on sublanes, pixels on lanes; all dots are bf16 x bf16 -> f32.
# ----------------------------------------------------------------------------

def _fused_seg_head_kernel(x1_ref, x2_ref, mT_ref, w1t_ref, b1_ref,
                           w2t_ref, b2_ref, w3t_ref, b3_ref, o_ref):
    x1 = x1_ref[...].astype(jnp.bfloat16)                          # (Cin, tp)
    x2 = x2_ref[...].astype(jnp.bfloat16)                          # (Cin, P2)
    # convf2 + ReLU (whole low-res slab; x2's block index only changes with the
    # batch index so the DMA is not repeated per pixel tile).
    f2h = jnp.maximum(
        jnp.dot(w2t_ref[...], x2, preferred_element_type=jnp.float32)
        + b2_ref[...], 0.0).astype(jnp.bfloat16)                   # (hid, P2)
    # convf1 + ReLU, then accumulate the Kron-upsampled f2 directly into it
    # (only one (hid, tp) f32 value stays live -> lower vreg pressure).
    h = jnp.maximum(
        jnp.dot(w1t_ref[...], x1, preferred_element_type=jnp.float32)
        + b1_ref[...], 0.0)
    h = h + jnp.dot(f2h, mT_ref[...], preferred_element_type=jnp.float32)
    y = jnp.dot(w3t_ref[...], h.astype(jnp.bfloat16),
                preferred_element_type=jnp.float32) + b3_ref[...]  # (Cout, tp)
    # Exact per-lane softmax over channels (approx reciprocal removed).
    m = jnp.max(y, axis=0, keepdims=True)
    e = jnp.exp(y - m)
    o_ref[...] = (e / jnp.sum(e, axis=0, keepdims=True)).astype(o_ref.dtype)


def fused_seg_head(x1, x2, mT, w1t, b1, w2t, b2, w3t, b3, *, max_tile=512):
    """x1:(B,Cin,P1), x2:(B,Cin,P2), mT:(P2,P1) bf16 -> softmax probs (B,Cout,P1)."""
    B, Cin, P1 = x1.shape
    P2 = x2.shape[2]
    hidden = w1t.shape[0]
    Cout = w3t.shape[0]
    tp = _pixel_tile(P1, max_tile)
    # v7x: keep a 'parallel' grid axis with >= 2 steps so both TensorCores work.
    if B * ((P1 + tp - 1) // tp) < 2 and P1 > 128:
        tp = _pixel_tile(P1, max(128, max_tile // 2))
    return pl.pallas_call(
        _fused_seg_head_kernel,
        out_shape=jax.ShapeDtypeStruct((B, Cout, P1), jnp.float32),
        grid=(B, pl.cdiv(P1, tp)),
        in_specs=[
            pl.BlockSpec((None, Cin, tp), lambda b_, i: (b_, 0, i)),
            pl.BlockSpec((None, Cin, P2), lambda b_, i: (b_, 0, 0)),
            pl.BlockSpec((P2, tp), lambda b_, i: (0, i)),
            pl.BlockSpec((hidden, Cin), lambda b_, i: (0, 0)),
            pl.BlockSpec((hidden, 1), lambda b_, i: (0, 0)),
            pl.BlockSpec((hidden, Cin), lambda b_, i: (0, 0)),
            pl.BlockSpec((hidden, 1), lambda b_, i: (0, 0)),
            pl.BlockSpec((Cout, hidden), lambda b_, i: (0, 0)),
            pl.BlockSpec((Cout, 1), lambda b_, i: (0, 0)),
        ],
        out_specs=pl.BlockSpec((None, Cout, tp), lambda b_, i: (b_, 0, i)),
        compiler_params=pltpu.CompilerParams(
            dimension_semantics=("parallel", "parallel")),
    )(x1, x2, mT, w1t, b1, w2t, b2, w3t, b3)


# ----------------------------------------------------------------------------
# Final bilinear resize to (480, 640) fused with channel argmax.
# Channel axis fused into the block; unrolled in-kernel loop over C.
# ----------------------------------------------------------------------------

def _resize_argmax_kernel(p_ref, whr_ref, ww_ref, prob_ref, seg_ref):
    # p_ref: (C, Hin, Win) f32 probs; whr: (th, Hin); ww: (Win, Wout).
    whr = whr_ref[...]
    ww = ww_ref[...]
    C = p_ref.shape[0]
    best = None
    seg = None
    for c in range(C):                       # static, unrolled (C = num_classes+1)
        # Separable upsample, width-first so both dot outputs are 640-lane dense.
        pw = jnp.dot(p_ref[c], ww, preferred_element_type=jnp.float32)   # (Hin, Wout)
        out = jnp.dot(whr, pw, preferred_element_type=jnp.float32)       # (th, Wout)
        prob_ref[c] = out.astype(prob_ref.dtype)   # argmax uses the f32 `out`
        if c == 0:
            best = out
            seg = jnp.zeros(out.shape, jnp.int32)
        else:
            better = out > best              # strict '>' => first-occurrence argmax
            best = jnp.where(better, out, best)
            seg = jnp.where(better, jnp.int32(c), seg)
    seg_ref[...] = seg


def bilinear_resize_argmax_nchw(x, wh, ww, *, prob_dtype=jnp.bfloat16):
    """x:(B,C,Hin,Win), wh:(Hout,Hin), ww:(Win,Wout) -> (prob (B,C,Hout,Wout), seg)."""
    B, C, Hin, Win = x.shape
    Hout, Wout = wh.shape[0], ww.shape[1]
    th = Hout
    for cand in (240, 160, 120, 96, 80, 60, 48, 40, 32, 24, 16, 8):
        if Hout % cand == 0:
            th = cand
            break
    return pl.pallas_call(
        _resize_argmax_kernel,
        out_shape=(
            jax.ShapeDtypeStruct((B, C, Hout, Wout), prob_dtype),
            # TODO(synk): PyTorch argmax yields int64; int32 kept (JAX default x32).
            jax.ShapeDtypeStruct((B, Hout, Wout), jnp.int32),
        ),
        grid=(B, Hout // th),
        in_specs=[
            pl.BlockSpec((None, C, Hin, Win), lambda b, r: (b, 0, 0, 0)),
            pl.BlockSpec((th, Hin), lambda b, r: (r, 0)),
            pl.BlockSpec((Win, Wout), lambda b, r: (0, 0)),
        ],
        out_specs=[
            pl.BlockSpec((None, C, th, Wout), lambda b, r: (b, 0, r, 0)),
            pl.BlockSpec((None, th, Wout), lambda b, r: (b, r, 0)),
        ],
        compiler_params=pltpu.CompilerParams(
            dimension_semantics=("parallel", "parallel"),
            # th=240 with a bf16 prob block double-buffers to ~8 MB; raise the
            # scoped-VMEM limit so v5e (16 MiB default) compiles comfortably too.
            vmem_limit_bytes=32 * 1024 * 1024),
    )(x, wh, ww)


# ----------------------------------------------------------------------------
# Host-built constants (cached), parameters, wrapper, label2bbx
# ----------------------------------------------------------------------------

def _interp_matrix(in_size, out_size, align_corners):
    """PyTorch-compatible 1-D bilinear interpolation matrix (out_size, in_size)."""
    m = np.zeros((out_size, in_size), dtype=np.float32)
    for i in range(out_size):
        if align_corners:
            src = 0.0 if out_size == 1 else i * (in_size - 1) / (out_size - 1)
        else:
            src = (i + 0.5) * (in_size / out_size) - 0.5
            if src < 0.0:
                src = 0.0
        i0 = int(np.floor(src))
        frac = src - i0
        i0 = min(i0, in_size - 1)
        i1 = min(i0 + 1, in_size - 1)
        m[i, i0] += 1.0 - frac
        m[i, i1] += frac
    return m


@functools.lru_cache(maxsize=None)
def _seg_head_constants(H2, W2, H, W):
    # feature_2 -> feature_1 bilinear upsample (align_corners=False) as a single
    # Kronecker matrix, stored transposed and in bf16 (bf16 x bf16 MXU dot).
    # TODO(synk): at realistic PoseCNN feature sizes this dense P2xP1 Kron should
    # become a separable two-pass (width then height) upsample to avoid the
    # quadratic HBM stream / VMEM block on v7x.
    uh = _interp_matrix(H2, H, align_corners=False)            # (H,  H2)
    uw = _interp_matrix(W2, W, align_corners=False)            # (W,  W2)
    return jnp.asarray(np.kron(uh, uw).T, dtype=jnp.bfloat16)  # (P2, P1)


@functools.lru_cache(maxsize=None)
def _final_resize_constants(H, W, Hout, Wout):
    wh = jnp.asarray(_interp_matrix(H, Hout, align_corners=True))    # (Hout, H)
    ww = jnp.asarray(_interp_matrix(W, Wout, align_corners=True).T)  # (W, Wout)
    return wh, ww


def init_params(key, in_ch=512, hidden=64, num_classes=10):
    """Kaiming-normal(fan_out, relu) 1x1-conv weights (stored transposed), zero biases."""
    k1, k2, k3 = jax.random.split(key, 3)

    def kaiming_t(k, cin, cout):
        std = np.sqrt(2.0 / cout)  # fan_out = cout * 1 * 1 for a 1x1 conv
        return (std * jax.random.normal(k, (cout, cin))).astype(jnp.float32)

    return {
        "w1t": kaiming_t(k1, in_ch, hidden), "b1": jnp.zeros((hidden, 1), jnp.float32),
        "w2t": kaiming_t(k2, in_ch, hidden), "b2": jnp.zeros((hidden, 1), jnp.float32),
        "w3t": kaiming_t(k3, hidden, num_classes + 1),
        "b3": jnp.zeros((num_classes + 1, 1), jnp.float32),
    }


def segmentation_branch_forward(feature1, feature2, params, num_classes=10,
                                out_hw=(480, 640), prob_dtype=jnp.bfloat16):
    """feature1:(B,512,H,W), feature2:(B,512,H//2,W//2) (NCHW, like PyTorch)."""
    B, Cin, H, W = feature1.shape
    _, _, H2, W2 = feature2.shape
    Hout, Wout = out_hw
    P1, P2 = H * W, H2 * W2

    w1t = params["w1t"].astype(jnp.bfloat16)
    w2t = params["w2t"].astype(jnp.bfloat16)
    w3t = params["w3t"].astype(jnp.bfloat16)

    # NCHW -> channels-first flattened pixels: zero-copy reshapes, no transposes.
    x1 = feature1.reshape(B, Cin, P1)
    x2 = feature2.reshape(B, Cin, P2)

    # One fused kernel: convf2+relu, Kron upsample, convf1+relu + add,
    # conv_f_res, exact channel softmax.
    mT = _seg_head_constants(H2, W2, H, W)                    # (P2, P1) bf16, cached
    probs = fused_seg_head(x1, x2, mT, w1t, params["b1"], w2t, params["b2"],
                           w3t, params["b3"])                 # (B, C+1, P1) f32
    probs = probs.reshape(B, num_classes + 1, H, W)           # zero-copy

    # Bilinear upsample to (480,640), align_corners=True, fused with channel argmax.
    wh, ww = _final_resize_constants(H, W, Hout, Wout)        # cached
    probability, segmentation = bilinear_resize_argmax_nchw(
        probs, wh, ww, prob_dtype=prob_dtype)
    return probability, segmentation


def label2bbx(label_np, num_classes):
    # TODO(synk): data-dependent, variable-length output (torch.where + .item()) has
    # no clean Pallas equivalent; computed host-side exactly like the reference.
    bbx = []
    bs = label_np.shape[0]
    for batch_id in range(bs):
        for cls_id in range(num_classes):
            if cls_id != 0:
                ys, xs = np.where(label_np[batch_id] == cls_id)
                if ys.size >= _LABEL2MASK_THRESHOL:
                    bbx.append([batch_id, int(xs.min()), int(ys.min()),
                                int(xs.max()), int(ys.max()), cls_id])
    return np.asarray(bbx, dtype=np.int64)


# ----------------------------------------------------------------------------
# Main
# ----------------------------------------------------------------------------

if __name__ == "__main__":
    num_classes = 10
    hidden = 64
    B, H, W = 2, 16, 16

    key = jax.random.PRNGKey(0)
    kf1, kf2, kparams = jax.random.split(key, 3)
    feature1 = jax.random.normal(kf1, (B, 512, H, W), dtype=jnp.float32)
    feature2 = jax.random.normal(kf2, (B, 512, H // 2, W // 2), dtype=jnp.float32)

    params = init_params(kparams, in_ch=512, hidden=hidden, num_classes=num_classes)

    probability, segmentation = segmentation_branch_forward(
        feature1, feature2, params, num_classes=num_classes)
    probability = jax.block_until_ready(probability)
    segmentation = jax.block_until_ready(segmentation)

    assert probability.shape == (B, num_classes + 1, 480, 640)
    assert segmentation.shape == (B, 480, 640)
    # Softmax (exact f32 normalization) sums to 1 per pixel; bilinear weights sum
    # to 1, so resized probabilities still sum to ~1 over channels. The only
    # remaining deviation is the bf16 quantization of the stored probability
    # (bounded by ~2^-9 over the 11-channel sum).
    s = np.asarray(jnp.sum(probability.astype(jnp.float32), axis=1))
    assert np.allclose(s, 1.0, atol=1e-2), "probability maps do not sum to 1"

    seg_np = np.asarray(segmentation)
    assert seg_np.min() >= 0 and seg_np.max() <= num_classes

    bbx = label2bbx(seg_np, num_classes)
    assert bbx.ndim in (1, 2)  # (0,) if empty, else (N, 6)

    print("KERNEL_OK")
</pallas_src>

<mosaic_0001>
module attributes {stable_mosaic.version = 11 : i64} {
  func.func @_fused_seg_head_kernel(%arg0: i32, %arg1: i32, %arg2: memref<1x512x256xf32, #tpu.memory_space<vmem>>, %arg3: memref<1x512x64xf32, #tpu.memory_space<vmem>>, %arg4: memref<64x256xbf16, #tpu.memory_space<vmem>>, %arg5: memref<64x512xbf16, #tpu.memory_space<vmem>>, %arg6: memref<64x1xf32, #tpu.memory_space<vmem>>, %arg7: memref<64x512xbf16, #tpu.memory_space<vmem>>, %arg8: memref<64x1xf32, #tpu.memory_space<vmem>>, %arg9: memref<11x64xbf16, #tpu.memory_space<vmem>>, %arg10: memref<11x1xf32, #tpu.memory_space<vmem>>, %arg11: memref<1x11x256xf32, #tpu.memory_space<vmem>>) attributes {dimension_semantics = [#tpu.dimension_semantics<parallel>, #tpu.dimension_semantics<parallel>], iteration_bounds = array<i64: 2, 1>, scalar_prefetch = 0 : i64, scratch_operands = 0 : i64, tpu.core_type = #tpu.core_type<tc>, window_params = [{transform_indices = @transform_0, window_bounds = array<i64: 1, 512, 256>}, {transform_indices = @transform_1, window_bounds = array<i64: 1, 512, 64>}, {transform_indices = @transform_2, window_bounds = array<i64: 64, 256>}, {pipeline_mode = #tpu.pipeline_mode<synchronous>, transform_indices = @transform_3, window_bounds = array<i64: 64, 512>}, {pipeline_mode = #tpu.pipeline_mode<synchronous>, transform_indices = @transform_4, window_bounds = array<i64: 64, 1>}, {pipeline_mode = #tpu.pipeline_mode<synchronous>, transform_indices = @transform_5, window_bounds = array<i64: 64, 512>}, {pipeline_mode = #tpu.pipeline_mode<synchronous>, transform_indices = @transform_6, window_bounds = array<i64: 64, 1>}, {pipeline_mode = #tpu.pipeline_mode<synchronous>, transform_indices = @transform_7, window_bounds = array<i64: 11, 64>}, {pipeline_mode = #tpu.pipeline_mode<synchronous>, transform_indices = @transform_8, window_bounds = array<i64: 11, 1>}, {transform_indices = @transform_9, window_bounds = array<i64: 1, 11, 256>}]} {
    %c0 = arith.constant 0 : index
    %c0_0 = arith.constant 0 : index
    %c0_1 = arith.constant 0 : index
    %0 = vector.load %arg2[%c0, %c0_0, %c0_1] : memref<1x512x256xf32, #tpu.memory_space<vmem>>, vector<1x512x256xf32>
    %1 = vector.shape_cast %0 : vector<1x512x256xf32> to vector<512x256xf32>
    %2 = arith.truncf %1 : vector<512x256xf32> to vector<512x256xbf16>
    %c0_2 = arith.constant 0 : index
    %c0_3 = arith.constant 0 : index
    %c0_4 = arith.constant 0 : index
    %3 = vector.load %arg3[%c0_2, %c0_3, %c0_4] : memref<1x512x64xf32, #tpu.memory_space<vmem>>, vector<1x512x64xf32>
    %4 = vector.shape_cast %3 : vector<1x512x64xf32> to vector<512x64xf32>
    %5 = arith.truncf %4 : vector<512x64xf32> to vector<512x64xbf16>
    %c0_5 = arith.constant 0 : index
    %c0_6 = arith.constant 0 : index
    %6 = vector.load %arg7[%c0_5, %c0_6] : memref<64x512xbf16, #tpu.memory_space<vmem>>, vector<64x512xbf16>
    %cst = arith.constant dense<0.000000e+00> : vector<64x64xf32>
    %7 = tpu.matmul %6, %5, %cst {dimension_numbers = #tpu.dot_dimension_numbers<[1], [0], [0], [1], [0, 0, 1, 1], [], []>} : vector<64x512xbf16>, vector<512x64xbf16>, vector<64x64xf32> -> vector<64x64xf32>
    %c0_7 = arith.constant 0 : index
    %c0_8 = arith.constant 0 : index
    %8 = vector.load %arg8[%c0_7, %c0_8] : memref<64x1xf32, #tpu.memory_space<vmem>>, vector<64x1xf32>
    %9 = vector.broadcast %8 : vector<64x1xf32> to vector<64x64xf32>
    %10 = arith.addf %7, %9 : vector<64x64xf32>
    %cst_9 = arith.constant 0.000000e+00 : f32
    %11 = vector.broadcast %cst_9 : f32 to vector<64x64xf32>
    %12 = arith.maximumf %10, %11 : vector<64x64xf32>
    %13 = arith.truncf %12 : vector<64x64xf32> to vector<64x64xbf16>
    %c0_10 = arith.constant 0 : index
    %c0_11 = arith.constant 0 : index
    %14 = vector.load %arg5[%c0_10, %c0_11] : memref<64x512xbf16, #tpu.memory_space<vmem>>, vector<64x512xbf16>
    %cst_12 = arith.constant dense<0.000000e+00> : vector<64x256xf32>
    %15 = tpu.matmul %14, %2, %cst_12 {dimension_numbers = #tpu.dot_dimension_numbers<[1], [0], [0], [1], [0, 0, 1, 1], [], []>} : vector<64x512xbf16>, vector<512x256xbf16>, vector<64x256xf32> -> vector<64x256xf32>
    %c0_13 = arith.constant 0 : index
    %c0_14 = arith.constant 0 : index
    %16 = vector.load %arg6[%c0_13, %c0_14] : memref<64x1xf32, #tpu.memory_space<vmem>>, vector<64x1xf32>
    %17 = vector.broadcast %16 : vector<64x1xf32> to vector<64x256xf32>
    %18 = arith.addf %15, %17 : vector<64x256xf32>
    %cst_15 = arith.constant 0.000000e+00 : f32
    %19 = vector.broadcast %cst_15 : f32 to vector<64x256xf32>
    %20 = arith.maximumf %18, %19 : vector<64x256xf32>
    %c0_16 = arith.constant 0 : index
    %c0_17 = arith.constant 0 : index
    %21 = vector.load %arg4[%c0_16, %c0_17] : memref<64x256xbf16, #tpu.memory_space<vmem>>, vector<64x256xbf16>
    %cst_18 = arith.constant dense<0.000000e+00> : vector<64x256xf32>
    %22 = tpu.matmul %13, %21, %cst_18 {dimension_numbers = #tpu.dot_dimension_numbers<[1], [0], [0], [1], [0, 0, 1, 1], [], []>} : vector<64x64xbf16>, vector<64x256xbf16>, vector<64x256xf32> -> vector<64x256xf32>
    %23 = arith.addf %20, %22 : vector<64x256xf32>
    %c0_19 = arith.constant 0 : index
    %c0_20 = arith.constant 0 : index
    %24 = vector.load %arg9[%c0_19, %c0_20] : memref<11x64xbf16, #tpu.memory_space<vmem>>, vector<11x64xbf16>
    %25 = arith.truncf %23 : vector<64x256xf32> to vector<64x256xbf16>
    %cst_21 = arith.constant dense<0.000000e+00> : vector<11x256xf32>
    %26 = tpu.matmul %24, %25, %cst_21 {dimension_numbers = #tpu.dot_dimension_numbers<[1], [0], [0], [1], [0, 0, 1, 1], [], []>} : vector<11x64xbf16>, vector<64x256xbf16>, vector<11x256xf32> -> vector<11x256xf32>
    %c0_22 = arith.constant 0 : index
    %c0_23 = arith.constant 0 : index
    %27 = vector.load %arg10[%c0_22, %c0_23] : memref<11x1xf32, #tpu.memory_space<vmem>>, vector<11x1xf32>
    %28 = vector.broadcast %27 : vector<11x1xf32> to vector<11x256xf32>
    %29 = arith.addf %26, %28 : vector<11x256xf32>
    %cst_24 = arith.constant dense<0xFF800000> : vector<256xf32>
    %30 = vector.multi_reduction <maximumf>, %29, %cst_24 [0] : vector<11x256xf32> to vector<256xf32>
    %31 = vector.shape_cast %30 : vector<256xf32> to vector<1x256xf32>
    %32 = vector.broadcast %31 : vector<1x256xf32> to vector<11x256xf32>
    %33 = arith.subf %29, %32 : vector<11x256xf32>
    %34 = math.exp %33 : vector<11x256xf32>
    %cst_25 = arith.constant dense<0.000000e+00> : vector<256xf32>
    %35 = vector.multi_reduction <add>, %34, %cst_25 [0] : vector<11x256xf32> to vector<256xf32>
    %36 = vector.shape_cast %35 : vector<256xf32> to vector<1x256xf32>
    %37 = vector.broadcast %36 : vector<1x256xf32> to vector<11x256xf32>
    %38 = arith.divf %34, %37 : vector<11x256xf32>
    %c0_26 = arith.constant 0 : index
    %c0_27 = arith.constant 0 : index
    %c0_28 = arith.constant 0 : index
    %39 = vector.load %arg11[%c0_26, %c0_27, %c0_28] : memref<1x11x256xf32, #tpu.memory_space<vmem>>, vector<1x11x256xf32>
    %40 = vector.shape_cast %39 : vector<1x11x256xf32> to vector<11x256xf32>
    %41 = vector.shape_cast %38 : vector<11x256xf32> to vector<1x11x256xf32>
    tpu.vector_store %arg11[%c0_26, %c0_27, %c0_28], %41 {strides = array<i32>} : memref<1x11x256xf32, #tpu.memory_space<vmem>>, vector<1x11x256xf32>,
    return
  }
  func.func @transform_0(%arg0: i32, %arg1: i32) -> (i32, i32, i32) {
    %c0_i32 = arith.constant 0 : i32
    %c0_i32_0 = arith.constant 0 : i32
    return %arg0, %c0_i32, %arg1 : i32, i32, i32
  }
  func.func @transform_1(%arg0: i32, %arg1: i32) -> (i32, i32, i32) {
    %c0_i32 = arith.constant 0 : i32
    %c0_i32_0 = arith.constant 0 : i32
    %c0_i32_1 = arith.constant 0 : i32
    return %arg0, %c0_i32, %c0_i32_0 : i32, i32, i32
  }
  func.func @transform_2(%arg0: i32, %arg1: i32) -> (i32, i32) {
    %c0_i32 = arith.constant 0 : i32
    %c0_i32_0 = arith.constant 0 : i32
    return %c0_i32, %arg1 : i32, i32
  }
  func.func @transform_3(%arg0: i32, %arg1: i32) -> (i32, i32) {
    %c0_i32 = arith.constant 0 : i32
    %c0_i32_0 = arith.constant 0 : i32
    %c0_i32_1 = arith.constant 0 : i32
    return %c0_i32, %c0_i32_0 : i32, i32
  }
  func.func @transform_4(%arg0: i32, %arg1: i32) -> (i32, i32) {
    %c0_i32 = arith.constant 0 : i32
    %c0_i32_0 = arith.constant 0 : i32
    %c0_i32_1 = arith.constant 0 : i32
    return %c0_i32, %c0_i32_0 : i32, i32
  }
  func.func @transform_5(%arg0: i32, %arg1: i32) -> (i32, i32) {
    %c0_i32 = arith.constant 0 : i32
    %c0_i32_0 = arith.constant 0 : i32
    %c0_i32_1 = arith.constant 0 : i32
    return %c0_i32, %c0_i32_0 : i32, i32
  }
  func.func @transform_6(%arg0: i32, %arg1: i32) -> (i32, i32) {
    %c0_i32 = arith.constant 0 : i32
    %c0_i32_0 = arith.constant 0 : i32
    %c0_i32_1 = arith.constant 0 : i32
    return %c0_i32, %c0_i32_0 : i32, i32
  }
  func.func @transform_7(%arg0: i32, %arg1: i32) -> (i32, i32) {
    %c0_i32 = arith.constant 0 : i32
    %c0_i32_0 = arith.constant 0 : i32
    %c0_i32_1 = arith.constant 0 : i32
    return %c0_i32, %c0_i32_0 : i32, i32
  }
  func.func @transform_8(%arg0: i32, %arg1: i32) -> (i32, i32) {
    %c0_i32 = arith.constant 0 : i32
    %c0_i32_0 = arith.constant 0 : i32
    %c0_i32_1 = arith.constant 0 : i32
    return %c0_i32, %c0_i32_0 : i32, i32
  }
  func.func @transform_9(%arg0: i32, %arg1: i32) -> (i32, i32, i32) {
    %c0_i32 = arith.constant 0 : i32
    %c0_i32_0 = arith.constant 0 : i32
    return %arg0, %c0_i32, %arg1 : i32, i32, i32
  }
}

</mosaic_0001>

<llo_original>
// kernel: tpu_custom_call.1
$region0: #{tpu_custom_call.1}
  #allocation0 [shape = 'u32[]', space=smem, size = 0x4, offset = 0x4, fixed_abs, tag = 'smem constant byte address 0x4 - core index']
  #allocation1 [shape = 'u32[72,128]{1,0:T(1,128)}', space=vmem, size = 0x9000, scoped, tag = 'internal scratch']
  %s0 = inlined_call_operand.hbm [shape: f32[2,512,256], index: 0, kind: input, shape index: {}]
  %s1 = inlined_call_operand.vmem [shape: f32[2,512,64], index: 1, kind: input, shape index: {}]
  %s2 = inlined_call_operand.vmem [shape: bf16[64,256], index: 2, kind: input, shape index: {}]
  %s3 = inlined_call_operand.vmem [shape: bf16[64,512], index: 3, kind: input, shape index: {}]
  %s4 = inlined_call_operand.vmem [shape: f32[64,1], index: 4, kind: input, shape index: {}]
  %s5 = inlined_call_operand.vmem [shape: bf16[64,512], index: 5, kind: input, shape index: {}]
  %s6 = inlined_call_operand.vmem [shape: f32[64,1], index: 6, kind: input, shape index: {}]
  %s7 = inlined_call_operand.vmem [shape: bf16[11,64], index: 7, kind: input, shape index: {}]
  %s8 = inlined_call_operand.vmem [shape: f32[11,1], index: 8, kind: input, shape index: {}]
  %s9 = inlined_call_operand.vmem [shape: f32[2,11,256], index: 9, kind: output, shape index: {}]
  %s10 = sld [smem:[#allocation0]]
  $region73: #{tpu_custom_call.1} parent=0
    _
  %s12 = ssub.s32 1, %s10
  %s13 = scalar_select 0, %s12, %s10
  $region1: #{tpu_custom_call.1} parent=0
    #allocation2 [shape = 'u8[1048576]{0}', space=vmem, size = 0x100000, scoped, tag = 'input window, operand 0']
    #allocation3 [shape = 's32[2]{0}', space=sflag, size = 0x8, scoped, tag = 'scoped memory for tpu_custom_call.1']
    %14 = vsyncpa [#allocation3], 0
    %s15 = scalar_lea.sflag [#allocation3], 1
    %16 = vsyncpa %s15, 0
    loop: start=0, step=1, limit=4
    $region2: #{tpu_custom_call.1} parent=1 // loop_pre_header
      _
    $region3: #{tpu_custom_call.1} parent=1 // loop_header
      %s18 = sphi 0, %s22
      %p19 = scmp.ge.s32.totalorder %s18, 4
      %s25 = sphi 0, %s37
      %s26 = sphi 0, %s33
      %s27 = sphi 0, %s25
      %s28 = sphi 0, %s26
      %s29 = sphi 0, %s27
      %s30 = sphi 0, %s28
      %s42 = sphi 0, %s44
      %s45 = sphi 0, %s42
      %s46 = sphi 0, %s45
      %s62 = sphi 0, %s46
      %s68 = sphi 0, %s70
      %s71 = sphi 0, %s68
      %s72 = sphi 0, %s71
      %s88 = sphi 0, %s72
      %s94 = sphi 0, %s96
      %s97 = sphi 0, %s94
      %s98 = sphi 0, %s97
      %s114 = sphi 0, %s98
      %s118 = sphi 0, %s118
      %s120 = sphi 0, %s118
      %s121 = sphi 0, %s120
      %s135 = sphi 0, %s121
      %s139 = sphi 0, %s139
      %s141 = sphi 0, %s139
      %s142 = sphi 0, %s141
      %s156 = sphi 0, %s142
      %s160 = sphi 0, %s160
      %s162 = sphi 0, %s160
      %s163 = sphi 0, %s162
      %s177 = sphi 0, %s163
      %s181 = sphi 0, %s181
      %s183 = sphi 0, %s181
      %s184 = sphi 0, %s183
      %s198 = sphi 0, %s184
      %s202 = sphi 0, %s202
      %s204 = sphi 0, %s202
      %s205 = sphi 0, %s204
      %s219 = sphi 0, %s205
      %s223 = sphi 0, %s223
      %s225 = sphi 0, %s223
      %s226 = sphi 0, %s225
      %s240 = sphi 0, %s226
      %s248 = sphi 0, %s250
      %s251 = sphi 0, %s248
      %s252 = sphi 0, %s251
      %s268 = sphi 0, %s252
    $region4: #{tpu_custom_call.1} parent=1 // loop_header_branch
      %21 = sbr.rel (%p19) target = $region8
    $region5: #{tpu_custom_call.1} parent=1 // loop_body
      %s23 = ssub.s32 %s18, 1
      %s24 = ssub.s32 %s18, 2
      %s31 = sadd.s32 1, %s26
      %p32 = scmp.ge.s32.totalorder %s31, 1
      %s33 = scalar_select %p32, 0, %s31
      %s34 = sadd.s32 1, %s25
      %s35 = scalar_select %p32, %s34, %s25
      %p36 = scmp.ge.s32.totalorder %s35, 2
      %s37 = scalar_select %p36, 0, %s35
      %s38 = ssub.s32 %s25, %s37
      %s39 = ssub.s32 %s26, %s33
      %s40 = sor.u32 %s38, %s39
      %p41 = scmp.eq.s32.totalorder %s40, 0
      %s43 = sadd.s32 %s42, 1
      %s44 = scalar_select %p41, %s42, %s43
      %p47 = pneg %p41
      %p48 = scmp.eq.s32.totalorder %s18, 1
      %p49 = por %p47, %p48
      %p50 = scmp.ne.s32.totalorder %s42, %s45
      %p51 = scmp.eq.s32.totalorder %s18, 0
      %p52 = por %p50, %p51
      %p53 = scmp.ne.s32.totalorder %s42, %s45
      %p54 = scmp.eq.s32.totalorder %s23, 1
      %p55 = por %p53, %p54
      %p56 = scmp.ne.s32.totalorder %s45, %s46
      %p57 = scmp.eq.s32.totalorder %s23, 0
      %p58 = por %p56, %p57
      %p59 = scmp.ne.s32.totalorder %s45, %s46
      %p60 = scmp.eq.s32.totalorder %s24, 1
      %p61 = por %p59, %p60
      %p63 = scmp.ne.s32.totalorder %s46, %s62
      %p64 = scmp.eq.s32.totalorder %s24, 0
      %p65 = por %p63, %p64
      %s66 = ssub.s32 %s25, %s37
      %p67 = scmp.eq.s32.totalorder %s66, 0
      %s69 = sadd.s32 %s68, 1
      %s70 = scalar_select %p67, %s68, %s69
      %p73 = pneg %p67
      %p74 = scmp.eq.s32.totalorder %s18, 1
      %p75 = por %p73, %p74
      %p76 = scmp.ne.s32.totalorder %s68, %s71
      %p77 = scmp.eq.s32.totalorder %s18, 0
      %p78 = por %p76, %p77
      %p79 = scmp.ne.s32.totalorder %s68, %s71
      %p80 = scmp.eq.s32.totalorder %s23, 1
      %p81 = por %p79, %p80
      %p82 = scmp.ne.s32.totalorder %s71, %s72
      %p83 = scmp.eq.s32.totalorder %s23, 0
      %p84 = por %p82, %p83
      %p85 = scmp.ne.s32.totalorder %s71, %s72
      %p86 = scmp.eq.s32.totalorder %s24, 1
      %p87 = por %p85, %p86
      %p89 = scmp.ne.s32.totalorder %s72, %s88
      %p90 = scmp.eq.s32.totalorder %s24, 0
      %p91 = por %p89, %p90
      %s92 = ssub.s32 %s26, %s33
      %p93 = scmp.eq.s32.totalorder %s92, 0
      %s95 = sadd.s32 %s94, 1
      %s96 = scalar_select %p93, %s94, %s95
      %p99 = pneg %p93
      %p100 = scmp.eq.s32.totalorder %s18, 1
      %p101 = por %p99, %p100
      %p102 = scmp.ne.s32.totalorder %s94, %s97
      %p103 = scmp.eq.s32.totalorder %s18, 0
      %p104 = por %p102, %p103
      %p105 = scmp.ne.s32.totalorder %s94, %s97
      %p106 = scmp.eq.s32.totalorder %s23, 1
      %p107 = por %p105, %p106
      %p108 = scmp.ne.s32.totalorder %s97, %s98
      %p109 = scmp.eq.s32.totalorder %s23, 0
      %p110 = por %p108, %p109
      %p111 = scmp.ne.s32.totalorder %s97, %s98
      %p112 = scmp.eq.s32.totalorder %s24, 1
      %p113 = por %p111, %p112
      %p115 = scmp.ne.s32.totalorder %s98, %s114
      %p116 = scmp.eq.s32.totalorder %s24, 0
      %p117 = por %p115, %p116
      %s119 = sadd.s32 %s118, 1
      %p122 = scmp.eq.s32.totalorder %s18, 1
      %p123 = scmp.ne.s32.totalorder %s118, %s120
      %p124 = scmp.eq.s32.totalorder %s18, 0
      %p125 = por %p123, %p124
      %p126 = scmp.ne.s32.totalorder %s118, %s120
      %p127 = scmp.eq.s32.totalorder %s23, 1
      %p128 = por %p126, %p127
      %p129 = scmp.ne.s32.totalorder %s120, %s121
      %p130 = scmp.eq.s32.totalorder %s23, 0
      %p131 = por %p129, %p130
      %p132 = scmp.ne.s32.totalorder %s120, %s121
      %p133 = scmp.eq.s32.totalorder %s24, 1
      %p134 = por %p132, %p133
      %p136 = scmp.ne.s32.totalorder %s121, %s135
      %p137 = scmp.eq.s32.totalorder %s24, 0
      %p138 = por %p136, %p137
      %s140 = sadd.s32 %s139, 1
      %p143 = scmp.eq.s32.totalorder %s18, 1
      %p144 = scmp.ne.s32.totalorder %s139, %s141
      %p145 = scmp.eq.s32.totalorder %s18, 0
      %p146 = por %p144, %p145
      %p147 = scmp.ne.s32.totalorder %s139, %s141
      %p148 = scmp.eq.s32.totalorder %s23, 1
      %p149 = por %p147, %p148
      %p150 = scmp.ne.s32.totalorder %s141, %s142
      %p151 = scmp.eq.s32.totalorder %s23, 0
      %p152 = por %p150, %p151
      %p153 = scmp.ne.s32.totalorder %s141, %s142
      %p154 = scmp.eq.s32.totalorder %s24, 1
      %p155 = por %p153, %p154
      %p157 = scmp.ne.s32.totalorder %s142, %s156
      %p158 = scmp.eq.s32.totalorder %s24, 0
      %p159 = por %p157, %p158
      %s161 = sadd.s32 %s160, 1
      %p164 = scmp.eq.s32.totalorder %s18, 1
      %p165 = scmp.ne.s32.totalorder %s160, %s162
      %p166 = scmp.eq.s32.totalorder %s18, 0
      %p167 = por %p165, %p166
      %p168 = scmp.ne.s32.totalorder %s160, %s162
      %p169 = scmp.eq.s32.totalorder %s23, 1
      %p170 = por %p168, %p169
      %p171 = scmp.ne.s32.totalorder %s162, %s163
      %p172 = scmp.eq.s32.totalorder %s23, 0
      %p173 = por %p171, %p172
      %p174 = scmp.ne.s32.totalorder %s162, %s163
      %p175 = scmp.eq.s32.totalorder %s24, 1
      %p176 = por %p174, %p175
      %p178 = scmp.ne.s32.totalorder %s163, %s177
      %p179 = scmp.eq.s32.totalorder %s24, 0
      %p180 = por %p178, %p179
      %s182 = sadd.s32 %s181, 1
      %p185 = scmp.eq.s32.totalorder %s18, 1
      %p186 = scmp.ne.s32.totalorder %s181, %s183
      %p187 = scmp.eq.s32.totalorder %s18, 0
      %p188 = por %p186, %p187
      %p189 = scmp.ne.s32.totalorder %s181, %s183
      %p190 = scmp.eq.s32.totalorder %s23, 1
      %p191 = por %p189, %p190
      %p192 = scmp.ne.s32.totalorder %s183, %s184
      %p193 = scmp.eq.s32.totalorder %s23, 0
      %p194 = por %p192, %p193
      %p195 = scmp.ne.s32.totalorder %s183, %s184
      %p196 = scmp.eq.s32.totalorder %s24, 1
      %p197 = por %p195, %p196
      %p199 = scmp.ne.s32.totalorder %s184, %s198
      %p200 = scmp.eq.s32.totalorder %s24, 0
      %p201 = por %p199, %p200
      %s203 = sadd.s32 %s202, 1
      %p206 = scmp.eq.s32.totalorder %s18, 1
      %p207 = scmp.ne.s32.totalorder %s202, %s204
      %p208 = scmp.eq.s32.totalorder %s18, 0
      %p209 = por %p207, %p208
      %p210 = scmp.ne.s32.totalorder %s202, %s204
      %p211 = scmp.eq.s32.totalorder %s23, 1
      %p212 = por %p210, %p211
      %p213 = scmp.ne.s32.totalorder %s204, %s205
      %p214 = scmp.eq.s32.totalorder %s23, 0
      %p215 = por %p213, %p214
      %p216 = scmp.ne.s32.totalorder %s204, %s205
      %p217 = scmp.eq.s32.totalorder %s24, 1
      %p218 = por %p216, %p217
      %p220 = scmp.ne.s32.totalorder %s205, %s219
      %p221 = scmp.eq.s32.totalorder %s24, 0
      %p222 = por %p220, %p221
      %s224 = sadd.s32 %s223, 1
      %p227 = scmp.eq.s32.totalorder %s18, 1
      %p228 = scmp.ne.s32.totalorder %s223, %s225
      %p229 = scmp.eq.s32.totalorder %s18, 0
      %p230 = por %p228, %p229
      %p231 = scmp.ne.s32.totalorder %s223, %s225
      %p232 = scmp.eq.s32.totalorder %s23, 1
      %p233 = por %p231, %p232
      %p234 = scmp.ne.s32.totalorder %s225, %s226
      %p235 = scmp.eq.s32.totalorder %s23, 0
      %p236 = por %p234, %p235
      %p237 = scmp.ne.s32.totalorder %s225, %s226
      %p238 = scmp.eq.s32.totalorder %s24, 1
      %p239 = por %p237, %p238
      %p241 = scmp.ne.s32.totalorder %s226, %s240
      %p242 = scmp.eq.s32.totalorder %s24, 0
      %p243 = por %p241, %p242
      %s244 = ssub.s32 %s25, %s37
      %s245 = ssub.s32 %s26, %s33
      %s246 = sor.u32 %s244, %s245
      %p247 = scmp.eq.s32.totalorder %s246, 0
      %s249 = sadd.s32 %s248, 1
      %s250 = scalar_select %p247, %s248, %s249
      %p253 = pneg %p247
      %p254 = scmp.eq.s32.totalorder %s18, 1
      %p255 = por %p253, %p254
      %p256 = scmp.ne.s32.totalorder %s248, %s251
      %p257 = scmp.eq.s32.totalorder %s18, 0
      %p258 = por %p256, %p257
      %p259 = scmp.ne.s32.totalorder %s248, %s251
      %p260 = scmp.eq.s32.totalorder %s23, 1
      %p261 = por %p259, %p260
      %p262 = scmp.ne.s32.totalorder %s251, %s252
      %p263 = scmp.eq.s32.totalorder %s23, 0
      %p264 = por %p262, %p263
      %p265 = scmp.ne.s32.totalorder %s251, %s252
      %p266 = scmp.eq.s32.totalorder %s24, 1
      %p267 = por %p265, %p266
      %p269 = scmp.ne.s32.totalorder %s252, %s268
      %p270 = scmp.eq.s32.totalorder %s24, 0
      %p271 = por %p269, %p270
      %p272 = scmp.le.s32.totalorder 1, %s18
      %p273 = scmp.lt.s32.totalorder %s18, 3
      %p274 = pnand %p272, %p273
      %p275 = pneg %p274
      // Predicated region
      $region9: #{tpu_custom_call.1} parent=5 // pred_check
        _
      $region10: #{tpu_custom_call.1} parent=5 // pred_check_branch
        %277 = sbr.rel (%p274) target = $region12
      $region11: #{tpu_custom_call.1} parent=5 // pred_region
        %s278 = ssub.s32 %s18, 1
        // Predicated region
        $region13: #{tpu_custom_call.1} parent=11 // pred_check
          %p279 = pneg %p110
        $region14: #{tpu_custom_call.1} parent=11 // pred_check_branch
          %281 = sbr.rel (%p279) target = $region16
        $region15: #{tpu_custom_call.1} parent=11 // pred_region
          %s282 = smul.u32 2, %s28
          %p283 = scmp.lt.s32.totalorder %s282, 1
          %s284 = scalar_select %p283, %s282, 1
          %s285 = smul.addr %s284, 4
          %s286 = scalar_lea.vmem %s2, %s285
          %s287 = smul.u32 2, %s28
        $region16: #{tpu_custom_call.1} parent=11 // pred_fallthru
          _
        // Predicated region
        $region17: #{tpu_custom_call.1} parent=11 // pred_check
          %p288 = pneg %p131
        $region18: #{tpu_custom_call.1} parent=11 // pred_check_branch
          %290 = sbr.rel (%p288) target = $region20
        $region19: #{tpu_custom_call.1} parent=11 // pred_region
          _
        $region20: #{tpu_custom_call.1} parent=11 // pred_fallthru
          _
        // Predicated region
        $region21: #{tpu_custom_call.1} parent=11 // pred_check
          %p291 = pneg %p152
        $region22: #{tpu_custom_call.1} parent=11 // pred_check_branch
          %293 = sbr.rel (%p291) target = $region24
        $region23: #{tpu_custom_call.1} parent=11 // pred_region
          _
        $region24: #{tpu_custom_call.1} parent=11 // pred_fallthru
          _
        // Predicated region
        $region25: #{tpu_custom_call.1} parent=11 // pred_check
          %p294 = pneg %p173
        $region26: #{tpu_custom_call.1} parent=11 // pred_check_branch
          %296 = sbr.rel (%p294) target = $region28
        $region27: #{tpu_custom_call.1} parent=11 // pred_region
          _
        $region28: #{tpu_custom_call.1} parent=11 // pred_fallthru
          _
        // Predicated region
        $region29: #{tpu_custom_call.1} parent=11 // pred_check
          %p297 = pneg %p194
        $region30: #{tpu_custom_call.1} parent=11 // pred_check_branch
          %299 = sbr.rel (%p297) target = $region32
        $region31: #{tpu_custom_call.1} parent=11 // pred_region
          _
        $region32: #{tpu_custom_call.1} parent=11 // pred_fallthru
          _
        // Predicated region
        $region33: #{tpu_custom_call.1} parent=11 // pred_check
          %p300 = pneg %p215
        $region34: #{tpu_custom_call.1} parent=11 // pred_check_branch
          %302 = sbr.rel (%p300) target = $region36
        $region35: #{tpu_custom_call.1} parent=11 // pred_region
          _
        $region36: #{tpu_custom_call.1} parent=11 // pred_fallthru
          _
        // Predicated region
        $region37: #{tpu_custom_call.1} parent=11 // pred_check
          %p303 = pneg %p236
        $region38: #{tpu_custom_call.1} parent=11 // pred_check_branch
          %305 = sbr.rel (%p303) target = $region40
        $region39: #{tpu_custom_call.1} parent=11 // pred_region
          _
        $region40: #{tpu_custom_call.1} parent=11 // pred_fallthru
          _
      $region12: #{tpu_custom_call.1} parent=5 // pred_fallthru
        _
      %p306 = scmp.lt.s32.totalorder %s18, 2
      // Predicated region
      $region41: #{tpu_custom_call.1} parent=5 // pred_check
        %p307 = pneg %p306
      $region42: #{tpu_custom_call.1} parent=5 // pred_check_branch
        %309 = sbr.rel (%p307) target = $region44
      $region43: #{tpu_custom_call.1} parent=5 // pred_region
        // Predicated region
        $region45: #{tpu_custom_call.1} parent=43 // pred_check
          %p310 = pneg %p52
        $region46: #{tpu_custom_call.1} parent=43 // pred_check_branch
          %312 = sbr.rel (%p310) target = $region48
        $region47: #{tpu_custom_call.1} parent=43 // pred_region
          %s313 = sand.u32 %s42, 1
          %s314 = scalar_lea.sflag [#allocation3], %s313
          %s315 = sand.u32 %s42, 1
          %s316 = smul.addr %s315, 1024
          %s317 = scalar_lea.vmem [#allocation2], %s316
          %s318 = smul.u32 2, %s26
          %320 = vsyncadd %s314, 0
          %s321 = smul.addr %s25, 128
          %s322 = sadd.s32 %s318, %s321
          %s323 = smul.addr %s322, 8
          %s324 = scalar_lea.hbm %s0, %s323
          %s325 = sshll.u32 %s324, 4
          %s326 = int_to_ptr.hbm [resolvable:$true] %s325
          %s327 = sshll.u32 %s317, 4
          %s328 = int_to_ptr.vmem [resolvable:$true] %s327
          %333 = dma.hbm_to_vmem [thread:$0]  %s326, 16384, %s328, %s314, 256, 256, 16
        $region48: #{tpu_custom_call.1} parent=43 // pred_fallthru
          _
        // Predicated region
        $region49: #{tpu_custom_call.1} parent=43 // pred_check
          %p334 = pneg %p78
        $region50: #{tpu_custom_call.1} parent=43 // pred_check_branch
          %336 = sbr.rel (%p334) target = $region52
        $region51: #{tpu_custom_call.1} parent=43 // pred_region
          %p337 = scmp.lt.s32.totalorder %s25, 1
          %s338 = scalar_select %p337, %s25, 1
          %s339 = smul.addr %s338, 64
          %s340 = smul.addr %s339, 8
          %s341 = scalar_lea.vmem %s1, %s340
        $region52: #{tpu_custom_call.1} parent=43 // pred_fallthru
          _
      $region44: #{tpu_custom_call.1} parent=5 // pred_fallthru
        _
      %p342 = scmp.le.s32.totalorder 1, %s18
      %p343 = scmp.lt.s32.totalorder %s18, 3
      %p344 = pnand %p342, %p343
      %p345 = pneg %p344
      // Predicated region
      $region53: #{tpu_custom_call.1} parent=5 // pred_check
        _
      $region54: #{tpu_custom_call.1} parent=5 // pred_check_branch
        %347 = sbr.rel (%p344) target = $region56
      $region55: #{tpu_custom_call.1} parent=5 // pred_region
        %s348 = ssub.s32 %s18, 1
        %s349 = sand.u32 %s45, 1
        %s350 = scalar_lea.sflag [#allocation3], %s349
        %s351 = sand.u32 %s45, 1
        %s352 = smul.addr %s351, 1024
        %s353 = scalar_lea.vmem [#allocation2], %s352
        // Predicated region
        $region57: #{tpu_custom_call.1} parent=55 // pred_check
          %p354 = pneg %p58
        $region58: #{tpu_custom_call.1} parent=55 // pred_check_branch
          %356 = sbr.rel (%p354) target = $region60
        $region59: #{tpu_custom_call.1} parent=55 // pred_region
          %358 = dma.done %s350, 16384
        $region60: #{tpu_custom_call.1} parent=55 // pred_fallthru
          _
        %s359 = sand.u32 %s45, 1
        %s360 = scalar_lea.sflag [#allocation3], %s359
        %s361 = sand.u32 %s45, 1
        %s362 = smul.addr %s361, 1024
        %s363 = scalar_lea.vmem [#allocation2], %s362
        %p364 = pneg %p58
        %p365 = pneg %p55
        %p366 = scmp.lt.s32.totalorder %s27, 1
        %s367 = scalar_select %p366, %s27, 1
        %s368 = smul.addr %s367, 64
        %s369 = smul.addr %s368, 8
        %s370 = scalar_lea.vmem %s1, %s369
        %p371 = pneg %p84
        %p372 = pneg %p81
        %s373 = smul.u32 2, %s28
        %p374 = scmp.lt.s32.totalorder %s373, 1
        %s375 = scalar_select %p374, %s373, 1
        %s376 = smul.addr %s375, 4
        %s377 = scalar_lea.vmem %s2, %s376
        %p378 = pneg %p110
        %p379 = pneg %p107
        %p380 = pneg %p131
        %p381 = pneg %p128
        %p382 = pneg %p152
        %p383 = pneg %p149
        %p384 = pneg %p173
        %p385 = pneg %p170
        %p386 = pneg %p194
        %p387 = pneg %p191
        %p388 = pneg %p215
        %p389 = pneg %p212
        %p390 = pneg %p236
        %p391 = pneg %p233
        %p392 = pneg %p264
        %p393 = pneg %p261
        %s394 = smul.u32 2, %s28
        %p395 = scmp.lt.s32.totalorder %s27, 1
        %s396 = scalar_select %p395, %s27, 1
        %p397 = scmp.lt.s32.totalorder %s394, 1
        %s398 = scalar_select %p397, %s394, 1
        %s399 = smul.addr %s396, 4
        %s400 = sadd.s32 %s398, %s399
        %s401 = smul.addr %s400, 8
        %s402 = scalar_lea.vmem %s9, %s401
        %s403 = smul.u32 2, %s28
        %p404 = scmp.lt.s32.totalorder %s27, 1
        %s405 = scalar_select %p404, %s27, 1
        %s406 = smul.addr %s405, 64
        %s407 = smul.addr %s406, 8
        %s408 = scalar_lea.vmem %s1, %s407
        %s409 = smul.u32 2, %s28
        %p410 = scmp.lt.s32.totalorder %s409, 1
        %s411 = scalar_select %p410, %s409, 1
        %s412 = smul.addr %s411, 4
        %s413 = scalar_lea.vmem %s2, %s412
        %s414 = smul.u32 2, %s28
        %s415 = smul.u32 2, %s28
        %p416 = scmp.lt.s32.totalorder %s27, 1
        %s417 = scalar_select %p416, %s27, 1
        %p418 = scmp.lt.s32.totalorder %s415, 1
        %s419 = scalar_select %p418, %s415, 1
        %s420 = smul.addr %s417, 4
        %s421 = sadd.s32 %s419, %s420
        %s422 = smul.addr %s421, 8
        %s423 = scalar_lea.vmem %s9, %s422
        %s424 = smul.u32 2, %s28
        %v426 = vld [vmem:[%s353] sm:$0xff]
        %v427 = vld [vmem:[%s353 + $0x8] sm:$0xff]
        %v428 = vld [vmem:[%s353 + $0x10] sm:$0xff]
        %v429 = vld [vmem:[%s353 + $0x18] sm:$0xff]
        %v430 = vld [vmem:[%s353 + $0x20] sm:$0xff]
        %v431 = vld [vmem:[%s353 + $0x28] sm:$0xff]
        %v432 = vld [vmem:[%s353 + $0x30] sm:$0xff]
        %v433 = vld [vmem:[%s353 + $0x38] sm:$0xff]
        %v434 = vld [vmem:[%s353 + $0x40] sm:$0xff]
        %v435 = vld [vmem:[%s353 + $0x48] sm:$0xff]
        %v436 = vld [vmem:[%s353 + $0x50] sm:$0xff]
        %v437 = vld [vmem:[%s353 + $0x58] sm:$0xff]
        %v438 = vld [vmem:[%s353 + $0x60] sm:$0xff]
        %v439 = vld [vmem:[%s353 + $0x68] sm:$0xff]
        %v440 = vld [vmem:[%s353 + $0x70] sm:$0xff]
        %v441 = vld [vmem:[%s353 + $0x78] sm:$0xff]
        %v442 = vld [vmem:[%s353 + $0x80] sm:$0xff]
        %v443 = vld [vmem:[%s353 + $0x88] sm:$0xff]
        %v444 = vld [vmem:[%s353 + $0x90] sm:$0xff]
        %v445 = vld [vmem:[%s353 + $0x98] sm:$0xff]
        %v446 = vld [vmem:[%s353 + $0xa0] sm:$0xff]
        %v447 = vld [vmem:[%s353 + $0xa8] sm:$0xff]
        %v448 = vld [vmem:[%s353 + $0xb0] sm:$0xff]
        %v449 = vld [vmem:[%s353 + $0xb8] sm:$0xff]
        %v450 = vld [vmem:[%s353 + $0xc0] sm:$0xff]
        %v451 = vld [vmem:[%s353 + $0xc8] sm:$0xff]
        %v452 = vld [vmem:[%s353 + $0xd0] sm:$0xff]
        %v453 = vld [vmem:[%s353 + $0xd8] sm:$0xff]
        %v454 = vld [vmem:[%s353 + $0xe0] sm:$0xff]
        %v455 = vld [vmem:[%s353 + $0xe8] sm:$0xff]
        %v456 = vld [vmem:[%s353 + $0xf0] sm:$0xff]
        %v457 = vld [vmem:[%s353 + $0xf8] sm:$0xff]
        %v458 = vld [vmem:[%s353 + $0x100] sm:$0xff]
        %v459 = vld [vmem:[%s353 + $0x108] sm:$0xff]
        %v460 = vld [vmem:[%s353 + $0x110] sm:$0xff]
        %v461 = vld [vmem:[%s353 + $0x118] sm:$0xff]
        %v462 = vld [vmem:[%s353 + $0x120] sm:$0xff]
        %v463 = vld [vmem:[%s353 + $0x128] sm:$0xff]
        %v464 = vld [vmem:[%s353 + $0x130] sm:$0xff]
        %v465 = vld [vmem:[%s353 + $0x138] sm:$0xff]
        %v466 = vld [vmem:[%s353 + $0x140] sm:$0xff]
        %v467 = vld [vmem:[%s353 + $0x148] sm:$0xff]
        %v468 = vld [vmem:[%s353 + $0x150] sm:$0xff]
        %v469 = vld [vmem:[%s353 + $0x158] sm:$0xff]
        %v470 = vld [vmem:[%s353 + $0x160] sm:$0xff]
        %v471 = vld [vmem:[%s353 + $0x168] sm:$0xff]
        %v472 = vld [vmem:[%s353 + $0x170] sm:$0xff]
        %v473 = vld [vmem:[%s353 + $0x178] sm:$0xff]
        %v474 = vld [vmem:[%s353 + $0x180] sm:$0xff]
        %v475 = vld [vmem:[%s353 + $0x188] sm:$0xff]
        %v476 = vld [vmem:[%s353 + $0x190] sm:$0xff]
        %v477 = vld [vmem:[%s353 + $0x198] sm:$0xff]
        %v478 = vld [vmem:[%s353 + $0x1a0] sm:$0xff]
        %v479 = vld [vmem:[%s353 + $0x1a8] sm:$0xff]
        %v480 = vld [vmem:[%s353 + $0x1b0] sm:$0xff]
        %v481 = vld [vmem:[%s353 + $0x1b8] sm:$0xff]
        %v482 = vld [vmem:[%s353 + $0x1c0] sm:$0xff]
        %v483 = vld [vmem:[%s353 + $0x1c8] sm:$0xff]
        %v484 = vld [vmem:[%s353 + $0x1d0] sm:$0xff]
        %v485 = vld [vmem:[%s353 + $0x1d8] sm:$0xff]
        %v486 = vld [vmem:[%s353 + $0x1e0] sm:$0xff]
        %v487 = vld [vmem:[%s353 + $0x1e8] sm:$0xff]
        %v488 = vld [vmem:[%s353 + $0x1f0] sm:$0xff]
        %v489 = vld [vmem:[%s353 + $0x1f8] sm:$0xff]
        %v490 = vld [vmem:[%s353 + $0x200] sm:$0xff]
        %v491 = vld [vmem:[%s353 + $0x208] sm:$0xff]
        %v492 = vld [vmem:[%s353 + $0x210] sm:$0xff]
        %v493 = vld [vmem:[%s353 + $0x218] sm:$0xff]
        %v494 = vld [vmem:[%s353 + $0x220] sm:$0xff]
        %v495 = vld [vmem:[%s353 + $0x228] sm:$0xff]
        %v496 = vld [vmem:[%s353 + $0x230] sm:$0xff]
        %v497 = vld [vmem:[%s353 + $0x238] sm:$0xff]
        %v498 = vld [vmem:[%s353 + $0x240] sm:$0xff]
        %v499 = vld [vmem:[%s353 + $0x248] sm:$0xff]
        %v500 = vld [vmem:[%s353 + $0x250] sm:$0xff]
        %v501 = vld [vmem:[%s353 + $0x258] sm:$0xff]
        %v502 = vld [vmem:[%s353 + $0x260] sm:$0xff]
        %v503 = vld [vmem:[%s353 + $0x268] sm:$0xff]
        %v504 = vld [vmem:[%s353 + $0x270] sm:$0xff]
        %v505 = vld [vmem:[%s353 + $0x278] sm:$0xff]
        %v506 = vld [vmem:[%s353 + $0x280] sm:$0xff]
        %v507 = vld [vmem:[%s353 + $0x288] sm:$0xff]
        %v508 = vld [vmem:[%s353 + $0x290] sm:$0xff]
        %v509 = vld [vmem:[%s353 + $0x298] sm:$0xff]
        %v510 = vld [vmem:[%s353 + $0x2a0] sm:$0xff]
        %v511 = vld [vmem:[%s353 + $0x2a8] sm:$0xff]
        %v512 = vld [vmem:[%s353 + $0x2b0] sm:$0xff]
        %v513 = vld [vmem:[%s353 + $0x2b8] sm:$0xff]
        %v514 = vld [vmem:[%s353 + $0x2c0] sm:$0xff]
        %v515 = vld [vmem:[%s353 + $0x2c8] sm:$0xff]
        %v516 = vld [vmem:[%s353 + $0x2d0] sm:$0xff]
        %v517 = vld [vmem:[%s353 + $0x2d8] sm:$0xff]
        %v518 = vld [vmem:[%s353 + $0x2e0] sm:$0xff]
        %v519 = vld [vmem:[%s353 + $0x2e8] sm:$0xff]
        %v520 = vld [vmem:[%s353 + $0x2f0] sm:$0xff]
        %v521 = vld [vmem:[%s353 + $0x2f8] sm:$0xff]
        %v522 = vld [vmem:[%s353 + $0x300] sm:$0xff]
        %v523 = vld [vmem:[%s353 + $0x308] sm:$0xff]
        %v524 = vld [vmem:[%s353 + $0x310] sm:$0xff]
        %v525 = vld [vmem:[%s353 + $0x318] sm:$0xff]
        %v526 = vld [vmem:[%s353 + $0x320] sm:$0xff]
        %v527 = vld [vmem:[%s353 + $0x328] sm:$0xff]
        %v528 = vld [vmem:[%s353 + $0x330] sm:$0xff]
        %v529 = vld [vmem:[%s353 + $0x338] sm:$0xff]
        %v530 = vld [vmem:[%s353 + $0x340] sm:$0xff]
        %v531 = vld [vmem:[%s353 + $0x348] sm:$0xff]
        %v532 = vld [vmem:[%s353 + $0x350] sm:$0xff]
        %v533 = vld [vmem:[%s353 + $0x358] sm:$0xff]
        %v534 = vld [vmem:[%s353 + $0x360] sm:$0xff]
        %v535 = vld [vmem:[%s353 + $0x368] sm:$0xff]
        %v536 = vld [vmem:[%s353 + $0x370] sm:$0xff]
        %v537 = vld [vmem:[%s353 + $0x378] sm:$0xff]
        %v538 = vld [vmem:[%s353 + $0x380] sm:$0xff]
        %v539 = vld [vmem:[%s353 + $0x388] sm:$0xff]
        %v540 = vld [vmem:[%s353 + $0x390] sm:$0xff]
        %v541 = vld [vmem:[%s353 + $0x398] sm:$0xff]
        %v542 = vld [vmem:[%s353 + $0x3a0] sm:$0xff]
        %v543 = vld [vmem:[%s353 + $0x3a8] sm:$0xff]
        %v544 = vld [vmem:[%s353 + $0x3b0] sm:$0xff]
        %v545 = vld [vmem:[%s353 + $0x3b8] sm:$0xff]
        %v546 = vld [vmem:[%s353 + $0x3c0] sm:$0xff]
        %v547 = vld [vmem:[%s353 + $0x3c8] sm:$0xff]
        %v548 = vld [vmem:[%s353 + $0x3d0] sm:$0xff]
        %v549 = vld [vmem:[%s353 + $0x3d8] sm:$0xff]
        %v550 = vld [vmem:[%s353 + $0x3e0] sm:$0xff]
        %v551 = vld [vmem:[%s353 + $0x3e8] sm:$0xff]
        %v552 = vld [vmem:[%s353 + $0x3f0] sm:$0xff]
        %v553 = vld [vmem:[%s353 + $0x3f8] sm:$0xff]
        %v554 = vpack.c.bf16 %v428, %v426
        %v555 = vpack.c.bf16 %v429, %v427
        %v556 = vpack.c.bf16 %v432, %v430
        %v557 = vpack.c.bf16 %v433, %v431
        %v558 = vpack.c.bf16 %v436, %v434
        %v559 = vpack.c.bf16 %v437, %v435
        %v560 = vpack.c.bf16 %v440, %v438
        %v561 = vpack.c.bf16 %v441, %v439
        %v562 = vpack.c.bf16 %v444, %v442
        %v563 = vpack.c.bf16 %v445, %v443
        %v564 = vpack.c.bf16 %v448, %v446
        %v565 = vpack.c.bf16 %v449, %v447
        %v566 = vpack.c.bf16 %v452, %v450
        %v567 = vpack.c.bf16 %v453, %v451
        %v568 = vpack.c.bf16 %v456, %v454
        %v569 = vpack.c.bf16 %v457, %v455
        %v570 = vpack.c.bf16 %v460, %v458
        %v571 = vpack.c.bf16 %v461, %v459
        %v572 = vpack.c.bf16 %v464, %v462
        %v573 = vpack.c.bf16 %v465, %v463
        %v574 = vpack.c.bf16 %v468, %v466
        %v575 = vpack.c.bf16 %v469, %v467
        %v576 = vpack.c.bf16 %v472, %v470
        %v577 = vpack.c.bf16 %v473, %v471
        %v578 = vpack.c.bf16 %v476, %v474
        %v579 = vpack.c.bf16 %v477, %v475
        %v580 = vpack.c.bf16 %v480, %v478
        %v581 = vpack.c.bf16 %v481, %v479
        %v582 = vpack.c.bf16 %v484, %v482
        %v583 = vpack.c.bf16 %v485, %v483
        %v584 = vpack.c.bf16 %v488, %v486
        %v585 = vpack.c.bf16 %v489, %v487
        %v586 = vpack.c.bf16 %v492, %v490
        %v587 = vpack.c.bf16 %v493, %v491
        %v588 = vpack.c.bf16 %v496, %v494
        %v589 = vpack.c.bf16 %v497, %v495
        %v590 = vpack.c.bf16 %v500, %v498
        %v591 = vpack.c.bf16 %v501, %v499
        %v592 = vpack.c.bf16 %v504, %v502
        %v593 = vpack.c.bf16 %v505, %v503
        %v594 = vpack.c.bf16 %v508, %v506
        %v595 = vpack.c.bf16 %v509, %v507
        %v596 = vpack.c.bf16 %v512, %v510
        %v597 = vpack.c.bf16 %v513, %v511
        %v598 = vpack.c.bf16 %v516, %v514
        %v599 = vpack.c.bf16 %v517, %v515
        %v600 = vpack.c.bf16 %v520, %v518
        %v601 = vpack.c.bf16 %v521, %v519
        %v602 = vpack.c.bf16 %v524, %v522
        %v603 = vpack.c.bf16 %v525, %v523
        %v604 = vpack.c.bf16 %v528, %v526
        %v605 = vpack.c.bf16 %v529, %v527
        %v606 = vpack.c.bf16 %v532, %v530
        %v607 = vpack.c.bf16 %v533, %v531
        %v608 = vpack.c.bf16 %v536, %v534
        %v609 = vpack.c.bf16 %v537, %v535
        %v610 = vpack.c.bf16 %v540, %v538
        %v611 = vpack.c.bf16 %v541, %v539
        %v612 = vpack.c.bf16 %v544, %v542
        %v613 = vpack.c.bf16 %v545, %v543
        %v614 = vpack.c.bf16 %v548, %v546
        %v615 = vpack.c.bf16 %v549, %v547
        %v616 = vpack.c.bf16 %v552, %v550
        %v617 = vpack.c.bf16 %v553, %v551
        %v618 = vld [vmem:[%s408] sm:$0xff]
        %v619 = vld [vmem:[%s408 + $0x8] sm:$0xff]
        %v620 = vld [vmem:[%s408 + $0x10] sm:$0xff]
        %v621 = vld [vmem:[%s408 + $0x18] sm:$0xff]
        %v622 = vld [vmem:[%s408 + $0x20] sm:$0xff]
        %v623 = vld [vmem:[%s408 + $0x28] sm:$0xff]
        %v624 = vld [vmem:[%s408 + $0x30] sm:$0xff]
        %v625 = vld [vmem:[%s408 + $0x38] sm:$0xff]
        %v626 = vld [vmem:[%s408 + $0x40] sm:$0xff]
        %v627 = vld [vmem:[%s408 + $0x48] sm:$0xff]
        %v628 = vld [vmem:[%s408 + $0x50] sm:$0xff]
        %v629 = vld [vmem:[%s408 + $0x58] sm:$0xff]
        %v630 = vld [vmem:[%s408 + $0x60] sm:$0xff]
        %v631 = vld [vmem:[%s408 + $0x68] sm:$0xff]
        %v632 = vld [vmem:[%s408 + $0x70] sm:$0xff]
        %v633 = vld [vmem:[%s408 + $0x78] sm:$0xff]
        %v634 = vld [vmem:[%s408 + $0x80] sm:$0xff]
        %v635 = vld [vmem:[%s408 + $0x88] sm:$0xff]
        %v636 = vld [vmem:[%s408 + $0x90] sm:$0xff]
        %v637 = vld [vmem:[%s408 + $0x98] sm:$0xff]
        %v638 = vld [vmem:[%s408 + $0xa0] sm:$0xff]
        %v639 = vld [vmem:[%s408 + $0xa8] sm:$0xff]
        %v640 = vld [vmem:[%s408 + $0xb0] sm:$0xff]
        %v641 = vld [vmem:[%s408 + $0xb8] sm:$0xff]
        %v642 = vld [vmem:[%s408 + $0xc0] sm:$0xff]
        %v643 = vld [vmem:[%s408 + $0xc8] sm:$0xff]
        %v644 = vld [vmem:[%s408 + $0xd0] sm:$0xff]
        %v645 = vld [vmem:[%s408 + $0xd8] sm:$0xff]
        %v646 = vld [vmem:[%s408 + $0xe0] sm:$0xff]
        %v647 = vld [vmem:[%s408 + $0xe8] sm:$0xff]
        %v648 = vld [vmem:[%s408 + $0xf0] sm:$0xff]
        %v649 = vld [vmem:[%s408 + $0xf8] sm:$0xff]
        %v650 = vld [vmem:[%s408 + $0x100] sm:$0xff]
        %v651 = vld [vmem:[%s408 + $0x108] sm:$0xff]
        %v652 = vld [vmem:[%s408 + $0x110] sm:$0xff]
        %v653 = vld [vmem:[%s408 + $0x118] sm:$0xff]
        %v654 = vld [vmem:[%s408 + $0x120] sm:$0xff]
        %v655 = vld [vmem:[%s408 + $0x128] sm:$0xff]
        %v656 = vld [vmem:[%s408 + $0x130] sm:$0xff]
        %v657 = vld [vmem:[%s408 + $0x138] sm:$0xff]
        %v658 = vld [vmem:[%s408 + $0x140] sm:$0xff]
        %v659 = vld [vmem:[%s408 + $0x148] sm:$0xff]
        %v660 = vld [vmem:[%s408 + $0x150] sm:$0xff]
        %v661 = vld [vmem:[%s408 + $0x158] sm:$0xff]
        %v662 = vld [vmem:[%s408 + $0x160] sm:$0xff]
        %v663 = vld [vmem:[%s408 + $0x168] sm:$0xff]
        %v664 = vld [vmem:[%s408 + $0x170] sm:$0xff]
        %v665 = vld [vmem:[%s408 + $0x178] sm:$0xff]
        %v666 = vld [vmem:[%s408 + $0x180] sm:$0xff]
        %v667 = vld [vmem:[%s408 + $0x188] sm:$0xff]
        %v668 = vld [vmem:[%s408 + $0x190] sm:$0xff]
        %v669 = vld [vmem:[%s408 + $0x198] sm:$0xff]
        %v670 = vld [vmem:[%s408 + $0x1a0] sm:$0xff]
        %v671 = vld [vmem:[%s408 + $0x1a8] sm:$0xff]
        %v672 = vld [vmem:[%s408 + $0x1b0] sm:$0xff]
        %v673 = vld [vmem:[%s408 + $0x1b8] sm:$0xff]
        %v674 = vld [vmem:[%s408 + $0x1c0] sm:$0xff]
        %v675 = vld [vmem:[%s408 + $0x1c8] sm:$0xff]
        %v676 = vld [vmem:[%s408 + $0x1d0] sm:$0xff]
        %v677 = vld [vmem:[%s408 + $0x1d8] sm:$0xff]
        %v678 = vld [vmem:[%s408 + $0x1e0] sm:$0xff]
        %v679 = vld [vmem:[%s408 + $0x1e8] sm:$0xff]
        %v680 = vld [vmem:[%s408 + $0x1f0] sm:$0xff]
        %v681 = vld [vmem:[%s408 + $0x1f8] sm:$0xff]
        %v682 = vpack.c.bf16 %v619, %v618
        %v683 = vpack.c.bf16 %v621, %v620
        %v684 = vpack.c.bf16 %v623, %v622
        %v685 = vpack.c.bf16 %v625, %v624
        %v686 = vpack.c.bf16 %v627, %v626
        %v687 = vpack.c.bf16 %v629, %v628
        %v688 = vpack.c.bf16 %v631, %v630
        %v689 = vpack.c.bf16 %v633, %v632
        %v690 = vpack.c.bf16 %v635, %v634
        %v691 = vpack.c.bf16 %v637, %v636
        %v692 = vpack.c.bf16 %v639, %v638
        %v693 = vpack.c.bf16 %v641, %v640
        %v694 = vpack.c.bf16 %v643, %v642
        %v695 = vpack.c.bf16 %v645, %v644
        %v696 = vpack.c.bf16 %v647, %v646
        %v697 = vpack.c.bf16 %v649, %v648
        %v698 = vpack.c.bf16 %v651, %v650
        %v699 = vpack.c.bf16 %v653, %v652
        %v700 = vpack.c.bf16 %v655, %v654
        %v701 = vpack.c.bf16 %v657, %v656
        %v702 = vpack.c.bf16 %v659, %v658
        %v703 = vpack.c.bf16 %v661, %v660
        %v704 = vpack.c.bf16 %v663, %v662
        %v705 = vpack.c.bf16 %v665, %v664
        %v706 = vpack.c.bf16 %v667, %v666
        %v707 = vpack.c.bf16 %v669, %v668
        %v708 = vpack.c.bf16 %v671, %v670
        %v709 = vpack.c.bf16 %v673, %v672
        %v710 = vpack.c.bf16 %v675, %v674
        %v711 = vpack.c.bf16 %v677, %v676
        %v712 = vpack.c.bf16 %v679, %v678
        %v713 = vpack.c.bf16 %v681, %v680
        %v714 = vld [vmem:[%s5] sm:$0xff]
        %v715 = vld [vmem:[%s5 + $0x8] sm:$0xff]
        %v716 = vld [vmem:[%s5 + $0x10] sm:$0xff]
        %v717 = vld [vmem:[%s5 + $0x18] sm:$0xff]
        %v718 = vld [vmem:[%s5 + $0x20] sm:$0xff]
        %v719 = vld [vmem:[%s5 + $0x28] sm:$0xff]
        %v720 = vld [vmem:[%s5 + $0x30] sm:$0xff]
        %v721 = vld [vmem:[%s5 + $0x38] sm:$0xff]
        %v722 = vld [vmem:[%s5 + $0x40] sm:$0xff]
        %v723 = vld [vmem:[%s5 + $0x48] sm:$0xff]
        %v724 = vld [vmem:[%s5 + $0x50] sm:$0xff]
        %v725 = vld [vmem:[%s5 + $0x58] sm:$0xff]
        %v726 = vld [vmem:[%s5 + $0x60] sm:$0xff]
        %v727 = vld [vmem:[%s5 + $0x68] sm:$0xff]
        %v728 = vld [vmem:[%s5 + $0x70] sm:$0xff]
        %v729 = vld [vmem:[%s5 + $0x78] sm:$0xff]
        %v730 = vld [vmem:[%s6] sm:$0xff]
        %v731 = vld [vmem:[%s6 + $0x8] sm:$0xff]
        %v732 = vld [vmem:[%s6 + $0x10] sm:$0xff]
        %v733 = vld [vmem:[%s6 + $0x18] sm:$0xff]
        %v734 = vld [vmem:[%s6 + $0x20] sm:$0xff]
        %v735 = vld [vmem:[%s6 + $0x28] sm:$0xff]
        %v736 = vld [vmem:[%s6 + $0x30] sm:$0xff]
        %v737 = vld [vmem:[%s6 + $0x38] sm:$0xff]
        %739 = vset.pattern.permute.xlu0 0
        %740 = vperm.xlu0 %739, %v730
        %v741 = vpop.permute.xlu0 %740
        %744 = vset.pattern.permute.xlu0 0
        %745 = vperm.xlu0 %744, %v731
        %v746 = vpop.permute.xlu0 %745
        %749 = vset.pattern.permute.xlu0 0
        %750 = vperm.xlu0 %749, %v732
        %v751 = vpop.permute.xlu0 %750
        %754 = vset.pattern.permute.xlu0 0
        %755 = vperm.xlu0 %754, %v733
        %v756 = vpop.permute.xlu0 %755
        %759 = vset.pattern.permute.xlu0 0
        %760 = vperm.xlu0 %759, %v734
        %v761 = vpop.permute.xlu0 %760
        %764 = vset.pattern.permute.xlu0 0
        %765 = vperm.xlu0 %764, %v735
        %v766 = vpop.permute.xlu0 %765
        %769 = vset.pattern.permute.xlu0 0
        %770 = vperm.xlu0 %769, %v736
        %v771 = vpop.permute.xlu0 %770
        %774 = vset.pattern.permute.xlu0 0
        %775 = vperm.xlu0 %774, %v737
        %v776 = vpop.permute.xlu0 %775
        %v794 = vunpack.c.l.b16 %v714
        %v795 = vunpack.c.h.b16 %v714
        %v796 = vunpack.c.l.b16 %v715
        %v797 = vunpack.c.h.b16 %v715
        %v798 = vunpack.c.l.b16 %v716
        %v799 = vunpack.c.h.b16 %v716
        %v800 = vunpack.c.l.b16 %v717
        %v801 = vunpack.c.h.b16 %v717
        %v802 = vunpack.c.l.b16 %v718
        %v803 = vunpack.c.h.b16 %v718
        %v804 = vunpack.c.l.b16 %v719
        %v805 = vunpack.c.h.b16 %v719
        %v806 = vunpack.c.l.b16 %v720
        %v807 = vunpack.c.h.b16 %v720
        %v808 = vunpack.c.l.b16 %v721
        %v809 = vunpack.c.h.b16 %v721
        %v810 = vunpack.c.l.b16 %v722
        %v811 = vunpack.c.h.b16 %v722
        %v812 = vunpack.c.l.b16 %v723
        %v813 = vunpack.c.h.b16 %v723
        %v814 = vunpack.c.l.b16 %v724
        %v815 = vunpack.c.h.b16 %v724
        %v816 = vunpack.c.l.b16 %v725
        %v817 = vunpack.c.h.b16 %v725
        %v818 = vunpack.c.l.b16 %v726
        %v819 = vunpack.c.h.b16 %v726
        %v820 = vunpack.c.l.b16 %v727
        %v821 = vunpack.c.h.b16 %v727
        %v822 = vunpack.c.l.b16 %v728
        %v823 = vunpack.c.h.b16 %v728
        %v824 = vunpack.c.l.b16 %v729
        %v825 = vunpack.c.h.b16 %v729
        %v826 = vpack.c.b16 %v798, %v794
        %v827 = vpack.c.b16 %v799, %v795
        %v828 = vpack.c.b16 %v800, %v796
        %v829 = vpack.c.b16 %v801, %v797
        %v830 = vpack.c.b16 %v806, %v802
        %v831 = vpack.c.b16 %v807, %v803
        %v832 = vpack.c.b16 %v808, %v804
        %v833 = vpack.c.b16 %v809, %v805
        %v834 = vpack.c.b16 %v814, %v810
        %v835 = vpack.c.b16 %v815, %v811
        %v836 = vpack.c.b16 %v816, %v812
        %v837 = vpack.c.b16 %v817, %v813
        %v838 = vpack.c.b16 %v822, %v818
        %v839 = vpack.c.b16 %v823, %v819
        %v840 = vpack.c.b16 %v824, %v820
        %v841 = vpack.c.b16 %v825, %v821
        %858 = vmatpush.bf16.msra.mxu0 %v689
        %859 = vmatpush.bf16.msra.mxu0 %v688
        %860 = vmatpush.bf16.msra.mxu0 %v687
        %861 = vmatpush.bf16.msra.mxu0 %v686
        %862 = vmatpush.bf16.msra.mxu0 %v685
        %863 = vmatpush.bf16.msra.mxu0 %v684
        %864 = vmatpush.bf16.msra.mxu0 %v683
        %865 = vmatpush.bf16.msra.mxu0 %v682
        %866 = vmatmul.bf16.gmra.mxu0 %v826
        %v867 = vpop.f32.mrf.mxu0
        %v868 = vadd.f32 %v741, %v867
        %v869 = vpop.f32.mrf.mxu0
        %v870 = vadd.f32 %v746, %v869
        %871 = vmatmul.bf16.gmra.mxu0 %v830
        %v872 = vpop.f32.mrf.mxu0
        %v873 = vadd.f32 %v751, %v872
        %v874 = vpop.f32.mrf.mxu0
        %v875 = vadd.f32 %v756, %v874
        %876 = vmatmul.bf16.gmra.mxu0 %v834
        %v877 = vpop.f32.mrf.mxu0
        %v878 = vadd.f32 %v761, %v877
        %v879 = vpop.f32.mrf.mxu0
        %v880 = vadd.f32 %v766, %v879
        %881 = vmatmul.bf16.gmra.mxu0 %v838
        %v882 = vpop.f32.mrf.mxu0
        %v883 = vadd.f32 %v771, %v882
        %v884 = vpop.f32.mrf.mxu0
        %v885 = vadd.f32 %v776, %v884
        %886 = vdwg.mxu0
        %887 = vmatpush.bf16.msra.mxu0 %v697
        %888 = vmatpush.bf16.msra.mxu0 %v696
        %889 = vmatpush.bf16.msra.mxu0 %v695
        %890 = vmatpush.bf16.msra.mxu0 %v694
        %891 = vmatpush.bf16.msra.mxu0 %v693
        %892 = vmatpush.bf16.msra.mxu0 %v692
        %893 = vmatpush.bf16.msra.mxu0 %v691
        %894 = vmatpush.bf16.msra.mxu0 %v690
        %895 = vmatmul.bf16.gmra.mxu0 %v827
        %v896 = vpop.f32.mrf.mxu0
        %v897 = vadd.f32 %v868, %v896
        %v898 = vpop.f32.mrf.mxu0
        %v899 = vadd.f32 %v870, %v898
        %900 = vmatmul.bf16.gmra.mxu0 %v831
        %v901 = vpop.f32.mrf.mxu0
        %v902 = vadd.f32 %v873, %v901
        %v903 = vpop.f32.mrf.mxu0
        %v904 = vadd.f32 %v875, %v903
        %905 = vmatmul.bf16.gmra.mxu0 %v835
        %v906 = vpop.f32.mrf.mxu0
        %v907 = vadd.f32 %v878, %v906
        %v908 = vpop.f32.mrf.mxu0
        %v909 = vadd.f32 %v880, %v908
        %910 = vmatmul.bf16.gmra.mxu0 %v839
        %v911 = vpop.f32.mrf.mxu0
        %v912 = vadd.f32 %v883, %v911
        %v913 = vpop.f32.mrf.mxu0
        %v914 = vadd.f32 %v885, %v913
        %915 = vdwg.mxu0
        %916 = vmatpush.bf16.msra.mxu0 %v705
        %917 = vmatpush.bf16.msra.mxu0 %v704
        %918 = vmatpush.bf16.msra.mxu0 %v703
        %919 = vmatpush.bf16.msra.mxu0 %v702
        %920 = vmatpush.bf16.msra.mxu0 %v701
        %921 = vmatpush.bf16.msra.mxu0 %v700
        %922 = vmatpush.bf16.msra.mxu0 %v699
        %923 = vmatpush.bf16.msra.mxu0 %v698
        %924 = vmatmul.bf16.gmra.mxu0 %v828
        %v925 = vpop.f32.mrf.mxu0
        %v926 = vadd.f32 %v897, %v925
        %v927 = vpop.f32.mrf.mxu0
        %v928 = vadd.f32 %v899, %v927
        %929 = vmatmul.bf16.gmra.mxu0 %v832
        %v930 = vpop.f32.mrf.mxu0
        %v931 = vadd.f32 %v902, %v930
        %v932 = vpop.f32.mrf.mxu0
        %v933 = vadd.f32 %v904, %v932
        %934 = vmatmul.bf16.gmra.mxu0 %v836
        %v935 = vpop.f32.mrf.mxu0
        %v936 = vadd.f32 %v907, %v935
        %v937 = vpop.f32.mrf.mxu0
        %v938 = vadd.f32 %v909, %v937
        %939 = vmatmul.bf16.gmra.mxu0 %v840
        %v940 = vpop.f32.mrf.mxu0
        %v941 = vadd.f32 %v912, %v940
        %v942 = vpop.f32.mrf.mxu0
        %v943 = vadd.f32 %v914, %v942
        %944 = vdwg.mxu0
        %945 = vmatpush.bf16.msra.mxu0 %v713
        %946 = vmatpush.bf16.msra.mxu0 %v712
        %947 = vmatpush.bf16.msra.mxu0 %v711
        %948 = vmatpush.bf16.msra.mxu0 %v710
        %949 = vmatpush.bf16.msra.mxu0 %v709
        %950 = vmatpush.bf16.msra.mxu0 %v708
        %951 = vmatpush.bf16.msra.mxu0 %v707
        %952 = vmatpush.bf16.msra.mxu0 %v706
        %953 = vmatmul.bf16.gmra.mxu0 %v829
        %v954 = vpop.f32.mrf.mxu0
        %v955 = vadd.f32 %v926, %v954
        %v956 = vpop.f32.mrf.mxu0
        %v957 = vadd.f32 %v928, %v956
        %958 = vmatmul.bf16.gmra.mxu0 %v833
        %v959 = vpop.f32.mrf.mxu0
        %v960 = vadd.f32 %v931, %v959
        %v961 = vpop.f32.mrf.mxu0
        %v962 = vadd.f32 %v933, %v961
        %963 = vmatmul.bf16.gmra.mxu0 %v837
        %v964 = vpop.f32.mrf.mxu0
        %v965 = vadd.f32 %v936, %v964
        %v966 = vpop.f32.mrf.mxu0
        %v967 = vadd.f32 %v938, %v966
        %968 = vmatmul.bf16.gmra.mxu0 %v841
        %v969 = vpop.f32.mrf.mxu0
        %v970 = vadd.f32 %v941, %v969
        %v971 = vpop.f32.mrf.mxu0
        %v972 = vadd.f32 %v943, %v971
        %973 = vdwg.mxu0
        %v974 = vmax.f32 %v955, 0.0
        %v975 = vmax.f32 %v957, 0.0
        %v976 = vmax.f32 %v960, 0.0
        %v977 = vmax.f32 %v962, 0.0
        %v978 = vmax.f32 %v965, 0.0
        %v979 = vmax.f32 %v967, 0.0
        %v980 = vmax.f32 %v970, 0.0
        %v981 = vmax.f32 %v972, 0.0
        %v982 = vpack.c.bf16 %v975, %v974
        %v983 = vpack.c.bf16 %v977, %v976
        %v984 = vpack.c.bf16 %v979, %v978
        %v985 = vpack.c.bf16 %v981, %v980
        %v986 = vld [vmem:[%s3] sm:$0xff]
        %v987 = vld [vmem:[%s3 + $0x8] sm:$0xff]
        %v988 = vld [vmem:[%s3 + $0x10] sm:$0xff]
        %v989 = vld [vmem:[%s3 + $0x18] sm:$0xff]
        %v990 = vld [vmem:[%s3 + $0x20] sm:$0xff]
        %v991 = vld [vmem:[%s3 + $0x28] sm:$0xff]
        %v992 = vld [vmem:[%s3 + $0x30] sm:$0xff]
        %v993 = vld [vmem:[%s3 + $0x38] sm:$0xff]
        %v994 = vld [vmem:[%s3 + $0x40] sm:$0xff]
        %v995 = vld [vmem:[%s3 + $0x48] sm:$0xff]
        %v996 = vld [vmem:[%s3 + $0x50] sm:$0xff]
        %v997 = vld [vmem:[%s3 + $0x58] sm:$0xff]
        %v998 = vld [vmem:[%s3 + $0x60] sm:$0xff]
        %v999 = vld [vmem:[%s3 + $0x68] sm:$0xff]
        %v1000 = vld [vmem:[%s3 + $0x70] sm:$0xff]
        %v1001 = vld [vmem:[%s3 + $0x78] sm:$0xff]
        %v1002 = vld [vmem:[%s4] sm:$0xff]
        %v1003 = vld [vmem:[%s4 + $0x8] sm:$0xff]
        %v1004 = vld [vmem:[%s4 + $0x10] sm:$0xff]
        %v1005 = vld [vmem:[%s4 + $0x18] sm:$0xff]
        %v1006 = vld [vmem:[%s4 + $0x20] sm:$0xff]
        %v1007 = vld [vmem:[%s4 + $0x28] sm:$0xff]
        %v1008 = vld [vmem:[%s4 + $0x30] sm:$0xff]
        %v1009 = vld [vmem:[%s4 + $0x38] sm:$0xff]
        %1011 = vset.pattern.permute.xlu0 0
        %1012 = vperm.xlu0 %1011, %v1002
        %v1013 = vpop.permute.xlu0 %1012
        %1016 = vset.pattern.permute.xlu0 0
        %1017 = vperm.xlu0 %1016, %v1003
        %v1018 = vpop.permute.xlu0 %1017
        %1021 = vset.pattern.permute.xlu0 0
        %1022 = vperm.xlu0 %1021, %v1004
        %v1023 = vpop.permute.xlu0 %1022
        %1026 = vset.pattern.permute.xlu0 0
        %1027 = vperm.xlu0 %1026, %v1005
        %v1028 = vpop.permute.xlu0 %1027
        %1031 = vset.pattern.permute.xlu0 0
        %1032 = vperm.xlu0 %1031, %v1006
        %v1033 = vpop.permute.xlu0 %1032
        %1036 = vset.pattern.permute.xlu0 0
        %1037 = vperm.xlu0 %1036, %v1007
        %v1038 = vpop.permute.xlu0 %1037
        %1041 = vset.pattern.permute.xlu0 0
        %1042 = vperm.xlu0 %1041, %v1008
        %v1043 = vpop.permute.xlu0 %1042
        %1046 = vset.pattern.permute.xlu0 0
        %1047 = vperm.xlu0 %1046, %v1009
        %v1048 = vpop.permute.xlu0 %1047
        %v1066 = vunpack.c.l.b16 %v986
        %v1067 = vunpack.c.h.b16 %v986
        %v1068 = vunpack.c.l.b16 %v987
        %v1069 = vunpack.c.h.b16 %v987
        %v1070 = vunpack.c.l.b16 %v988
        %v1071 = vunpack.c.h.b16 %v988
        %v1072 = vunpack.c.l.b16 %v989
        %v1073 = vunpack.c.h.b16 %v989
        %v1074 = vunpack.c.l.b16 %v990
        %v1075 = vunpack.c.h.b16 %v990
        %v1076 = vunpack.c.l.b16 %v991
        %v1077 = vunpack.c.h.b16 %v991
        %v1078 = vunpack.c.l.b16 %v992
        %v1079 = vunpack.c.h.b16 %v992
        %v1080 = vunpack.c.l.b16 %v993
        %v1081 = vunpack.c.h.b16 %v993
        %v1082 = vunpack.c.l.b16 %v994
        %v1083 = vunpack.c.h.b16 %v994
        %v1084 = vunpack.c.l.b16 %v995
        %v1085 = vunpack.c.h.b16 %v995
        %v1086 = vunpack.c.l.b16 %v996
        %v1087 = vunpack.c.h.b16 %v996
        %v1088 = vunpack.c.l.b16 %v997
        %v1089 = vunpack.c.h.b16 %v997
        %v1090 = vunpack.c.l.b16 %v998
        %v1091 = vunpack.c.h.b16 %v998
        %v1092 = vunpack.c.l.b16 %v999
        %v1093 = vunpack.c.h.b16 %v999
        %v1094 = vunpack.c.l.b16 %v1000
        %v1095 = vunpack.c.h.b16 %v1000
        %v1096 = vunpack.c.l.b16 %v1001
        %v1097 = vunpack.c.h.b16 %v1001
        %v1098 = vpack.c.b16 %v1070, %v1066
        %v1099 = vpack.c.b16 %v1071, %v1067
        %v1100 = vpack.c.b16 %v1072, %v1068
        %v1101 = vpack.c.b16 %v1073, %v1069
        %v1102 = vpack.c.b16 %v1078, %v1074
        %v1103 = vpack.c.b16 %v1079, %v1075
        %v1104 = vpack.c.b16 %v1080, %v1076
        %v1105 = vpack.c.b16 %v1081, %v1077
        %v1106 = vpack.c.b16 %v1086, %v1082
        %v1107 = vpack.c.b16 %v1087, %v1083
        %v1108 = vpack.c.b16 %v1088, %v1084
        %v1109 = vpack.c.b16 %v1089, %v1085
        %v1110 = vpack.c.b16 %v1094, %v1090
        %v1111 = vpack.c.b16 %v1095, %v1091
        %v1112 = vpack.c.b16 %v1096, %v1092
        %v1113 = vpack.c.b16 %v1097, %v1093
        %1130 = vmatpush.bf16.msra.mxu0 %v568
        %1131 = vmatpush.bf16.msra.mxu0 %v566
        %1132 = vmatpush.bf16.msra.mxu0 %v564
        %1133 = vmatpush.bf16.msra.mxu0 %v562
        %1134 = vmatpush.bf16.msra.mxu0 %v560
        %1135 = vmatpush.bf16.msra.mxu0 %v558
        %1136 = vmatpush.bf16.msra.mxu0 %v556
        %1137 = vmatpush.bf16.msra.mxu0 %v554
        %1138 = vmatmul.bf16.gmra.mxu0 %v1098
        %v1139 = vpop.f32.mrf.mxu0
        %v1140 = vadd.f32 %v1013, %v1139
        %v1141 = vpop.f32.mrf.mxu0
        %v1142 = vadd.f32 %v1018, %v1141
        %1143 = vmatmul.bf16.gmra.mxu0 %v1102
        %v1144 = vpop.f32.mrf.mxu0
        %v1145 = vadd.f32 %v1023, %v1144
        %v1146 = vpop.f32.mrf.mxu0
        %v1147 = vadd.f32 %v1028, %v1146
        %1148 = vmatmul.bf16.gmra.mxu0 %v1106
        %v1149 = vpop.f32.mrf.mxu0
        %v1150 = vadd.f32 %v1033, %v1149
        %v1151 = vpop.f32.mrf.mxu0
        %v1152 = vadd.f32 %v1038, %v1151
        %1153 = vmatmul.bf16.gmra.mxu0 %v1110
        %v1154 = vpop.f32.mrf.mxu0
        %v1155 = vadd.f32 %v1043, %v1154
        %v1156 = vpop.f32.mrf.mxu0
        %v1157 = vadd.f32 %v1048, %v1156
        %1158 = vdwg.mxu0
        %1159 = vmatpush.bf16.msra.mxu0 %v584
        %1160 = vmatpush.bf16.msra.mxu0 %v582
        %1161 = vmatpush.bf16.msra.mxu0 %v580
        %1162 = vmatpush.bf16.msra.mxu0 %v578
        %1163 = vmatpush.bf16.msra.mxu0 %v576
        %1164 = vmatpush.bf16.msra.mxu0 %v574
        %1165 = vmatpush.bf16.msra.mxu0 %v572
        %1166 = vmatpush.bf16.msra.mxu0 %v570
        %1167 = vmatmul.bf16.gmra.mxu0 %v1099
        %v1168 = vpop.f32.mrf.mxu0
        %v1169 = vadd.f32 %v1140, %v1168
        %v1170 = vpop.f32.mrf.mxu0
        %v1171 = vadd.f32 %v1142, %v1170
        %1172 = vmatmul.bf16.gmra.mxu0 %v1103
        %v1173 = vpop.f32.mrf.mxu0
        %v1174 = vadd.f32 %v1145, %v1173
        %v1175 = vpop.f32.mrf.mxu0
        %v1176 = vadd.f32 %v1147, %v1175
        %1177 = vmatmul.bf16.gmra.mxu0 %v1107
        %v1178 = vpop.f32.mrf.mxu0
        %v1179 = vadd.f32 %v1150, %v1178
        %v1180 = vpop.f32.mrf.mxu0
        %v1181 = vadd.f32 %v1152, %v1180
        %1182 = vmatmul.bf16.gmra.mxu0 %v1111
        %v1183 = vpop.f32.mrf.mxu0
        %v1184 = vadd.f32 %v1155, %v1183
        %v1185 = vpop.f32.mrf.mxu0
        %v1186 = vadd.f32 %v1157, %v1185
        %1187 = vdwg.mxu0
        %1188 = vmatpush.bf16.msra.mxu0 %v600
        %1189 = vmatpush.bf16.msra.mxu0 %v598
        %1190 = vmatpush.bf16.msra.mxu0 %v596
        %1191 = vmatpush.bf16.msra.mxu0 %v594
        %1192 = vmatpush.bf16.msra.mxu0 %v592
        %1193 = vmatpush.bf16.msra.mxu0 %v590
        %1194 = vmatpush.bf16.msra.mxu0 %v588
        %1195 = vmatpush.bf16.msra.mxu0 %v586
        %1196 = vmatmul.bf16.gmra.mxu0 %v1100
        %v1197 = vpop.f32.mrf.mxu0
        %v1198 = vadd.f32 %v1169, %v1197
        %v1199 = vpop.f32.mrf.mxu0
        %v1200 = vadd.f32 %v1171, %v1199
        %1201 = vmatmul.bf16.gmra.mxu0 %v1104
        %v1202 = vpop.f32.mrf.mxu0
        %v1203 = vadd.f32 %v1174, %v1202
        %v1204 = vpop.f32.mrf.mxu0
        %v1205 = vadd.f32 %v1176, %v1204
        %1206 = vmatmul.bf16.gmra.mxu0 %v1108
        %v1207 = vpop.f32.mrf.mxu0
        %v1208 = vadd.f32 %v1179, %v1207
        %v1209 = vpop.f32.mrf.mxu0
        %v1210 = vadd.f32 %v1181, %v1209
        %1211 = vmatmul.bf16.gmra.mxu0 %v1112
        %v1212 = vpop.f32.mrf.mxu0
        %v1213 = vadd.f32 %v1184, %v1212
        %v1214 = vpop.f32.mrf.mxu0
        %v1215 = vadd.f32 %v1186, %v1214
        %1216 = vdwg.mxu0
        %1217 = vmatpush.bf16.msra.mxu0 %v616
        %1218 = vmatpush.bf16.msra.mxu0 %v614
        %1219 = vmatpush.bf16.msra.mxu0 %v612
        %1220 = vmatpush.bf16.msra.mxu0 %v610
        %1221 = vmatpush.bf16.msra.mxu0 %v608
        %1222 = vmatpush.bf16.msra.mxu0 %v606
        %1223 = vmatpush.bf16.msra.mxu0 %v604
        %1224 = vmatpush.bf16.msra.mxu0 %v602
        %1225 = vmatmul.bf16.gmra.mxu0 %v1101
        %v1226 = vpop.f32.mrf.mxu0
        %v1227 = vadd.f32 %v1198, %v1226
        %v1228 = vpop.f32.mrf.mxu0
        %v1229 = vadd.f32 %v1200, %v1228
        %1230 = vmatmul.bf16.gmra.mxu0 %v1105
        %v1231 = vpop.f32.mrf.mxu0
        %v1232 = vadd.f32 %v1203, %v1231
        %v1233 = vpop.f32.mrf.mxu0
        %v1234 = vadd.f32 %v1205, %v1233
        %1235 = vmatmul.bf16.gmra.mxu0 %v1109
        %v1236 = vpop.f32.mrf.mxu0
        %v1237 = vadd.f32 %v1208, %v1236
        %v1238 = vpop.f32.mrf.mxu0
        %v1239 = vadd.f32 %v1210, %v1238
        %1240 = vmatmul.bf16.gmra.mxu0 %v1113
        %v1241 = vpop.f32.mrf.mxu0
        %v1242 = vadd.f32 %v1213, %v1241
        %v1243 = vpop.f32.mrf.mxu0
        %v1244 = vadd.f32 %v1215, %v1243
        %1245 = vdwg.mxu0
        %1246 = vmatpush.bf16.msra.mxu0 %v569
        %1247 = vmatpush.bf16.msra.mxu0 %v567
        %1248 = vmatpush.bf16.msra.mxu0 %v565
        %1249 = vmatpush.bf16.msra.mxu0 %v563
        %1250 = vmatpush.bf16.msra.mxu0 %v561
        %1251 = vmatpush.bf16.msra.mxu0 %v559
        %1252 = vmatpush.bf16.msra.mxu0 %v557
        %1253 = vmatpush.bf16.msra.mxu0 %v555
        %1254 = vmatmul.bf16.gmra.mxu0 %v1098
        %v1255 = vpop.f32.mrf.mxu0
        %v1256 = vadd.f32 %v1013, %v1255
        %v1257 = vpop.f32.mrf.mxu0
        %v1258 = vadd.f32 %v1018, %v1257
        %1259 = vmatmul.bf16.gmra.mxu0 %v1102
        %v1260 = vpop.f32.mrf.mxu0
        %v1261 = vadd.f32 %v1023, %v1260
        %v1262 = vpop.f32.mrf.mxu0
        %v1263 = vadd.f32 %v1028, %v1262
        %1264 = vmatmul.bf16.gmra.mxu0 %v1106
        %v1265 = vpop.f32.mrf.mxu0
        %v1266 = vadd.f32 %v1033, %v1265
        %v1267 = vpop.f32.mrf.mxu0
        %v1268 = vadd.f32 %v1038, %v1267
        %1269 = vmatmul.bf16.gmra.mxu0 %v1110
        %v1270 = vpop.f32.mrf.mxu0
        %v1271 = vadd.f32 %v1043, %v1270
        %v1272 = vpop.f32.mrf.mxu0
        %v1273 = vadd.f32 %v1048, %v1272
        %1274 = vdwg.mxu0
        %1275 = vmatpush.bf16.msra.mxu0 %v585
        %1276 = vmatpush.bf16.msra.mxu0 %v583
        %1277 = vmatpush.bf16.msra.mxu0 %v581
        %1278 = vmatpush.bf16.msra.mxu0 %v579
        %1279 = vmatpush.bf16.msra.mxu0 %v577
        %1280 = vmatpush.bf16.msra.mxu0 %v575
        %1281 = vmatpush.bf16.msra.mxu0 %v573
        %1282 = vmatpush.bf16.msra.mxu0 %v571
        %1283 = vmatmul.bf16.gmra.mxu0 %v1099
        %v1284 = vpop.f32.mrf.mxu0
        %v1285 = vadd.f32 %v1256, %v1284
        %v1286 = vpop.f32.mrf.mxu0
        %v1287 = vadd.f32 %v1258, %v1286
        %1288 = vmatmul.bf16.gmra.mxu0 %v1103
        %v1289 = vpop.f32.mrf.mxu0
        %v1290 = vadd.f32 %v1261, %v1289
        %v1291 = vpop.f32.mrf.mxu0
        %v1292 = vadd.f32 %v1263, %v1291
        %1293 = vmatmul.bf16.gmra.mxu0 %v1107
        %v1294 = vpop.f32.mrf.mxu0
        %v1295 = vadd.f32 %v1266, %v1294
        %v1296 = vpop.f32.mrf.mxu0
        %v1297 = vadd.f32 %v1268, %v1296
        %1298 = vmatmul.bf16.gmra.mxu0 %v1111
        %v1299 = vpop.f32.mrf.mxu0
        %v1300 = vadd.f32 %v1271, %v1299
        %v1301 = vpop.f32.mrf.mxu0
        %v1302 = vadd.f32 %v1273, %v1301
        %1303 = vdwg.mxu0
        %1304 = vmatpush.bf16.msra.mxu0 %v601
        %1305 = vmatpush.bf16.msra.mxu0 %v599
        %1306 = vmatpush.bf16.msra.mxu0 %v597
        %1307 = vmatpush.bf16.msra.mxu0 %v595
        %1308 = vmatpush.bf16.msra.mxu0 %v593
        %1309 = vmatpush.bf16.msra.mxu0 %v591
        %1310 = vmatpush.bf16.msra.mxu0 %v589
        %1311 = vmatpush.bf16.msra.mxu0 %v587
        %1312 = vmatmul.bf16.gmra.mxu0 %v1100
        %v1313 = vpop.f32.mrf.mxu0
        %v1314 = vadd.f32 %v1285, %v1313
        %v1315 = vpop.f32.mrf.mxu0
        %v1316 = vadd.f32 %v1287, %v1315
        %1317 = vmatmul.bf16.gmra.mxu0 %v1104
        %v1318 = vpop.f32.mrf.mxu0
        %v1319 = vadd.f32 %v1290, %v1318
        %v1320 = vpop.f32.mrf.mxu0
        %v1321 = vadd.f32 %v1292, %v1320
        %1322 = vmatmul.bf16.gmra.mxu0 %v1108
        %v1323 = vpop.f32.mrf.mxu0
        %v1324 = vadd.f32 %v1295, %v1323
        %v1325 = vpop.f32.mrf.mxu0
        %v1326 = vadd.f32 %v1297, %v1325
        %1327 = vmatmul.bf16.gmra.mxu0 %v1112
        %v1328 = vpop.f32.mrf.mxu0
        %v1329 = vadd.f32 %v1300, %v1328
        %v1330 = vpop.f32.mrf.mxu0
        %v1331 = vadd.f32 %v1302, %v1330
        %1332 = vdwg.mxu0
        %1333 = vmatpush.bf16.msra.mxu0 %v617
        %1334 = vmatpush.bf16.msra.mxu0 %v615
        %1335 = vmatpush.bf16.msra.mxu0 %v613
        %1336 = vmatpush.bf16.msra.mxu0 %v611
        %1337 = vmatpush.bf16.msra.mxu0 %v609
        %1338 = vmatpush.bf16.msra.mxu0 %v607
        %1339 = vmatpush.bf16.msra.mxu0 %v605
        %1340 = vmatpush.bf16.msra.mxu0 %v603
        %1341 = vmatmul.bf16.gmra.mxu0 %v1101
        %v1342 = vpop.f32.mrf.mxu0
        %v1343 = vadd.f32 %v1314, %v1342
        %v1344 = vpop.f32.mrf.mxu0
        %v1345 = vadd.f32 %v1316, %v1344
        %1346 = vmatmul.bf16.gmra.mxu0 %v1105
        %v1347 = vpop.f32.mrf.mxu0
        %v1348 = vadd.f32 %v1319, %v1347
        %v1349 = vpop.f32.mrf.mxu0
        %v1350 = vadd.f32 %v1321, %v1349
        %1351 = vmatmul.bf16.gmra.mxu0 %v1109
        %v1352 = vpop.f32.mrf.mxu0
        %v1353 = vadd.f32 %v1324, %v1352
        %v1354 = vpop.f32.mrf.mxu0
        %v1355 = vadd.f32 %v1326, %v1354
        %1356 = vmatmul.bf16.gmra.mxu0 %v1113
        %v1357 = vpop.f32.mrf.mxu0
        %v1358 = vadd.f32 %v1329, %v1357
        %v1359 = vpop.f32.mrf.mxu0
        %v1360 = vadd.f32 %v1331, %v1359
        %1361 = vdwg.mxu0
        %v1362 = vmax.f32 %v1227, 0.0
        %v1363 = vmax.f32 %v1343, 0.0
        %v1364 = vmax.f32 %v1229, 0.0
        %v1365 = vmax.f32 %v1345, 0.0
        %v1366 = vmax.f32 %v1232, 0.0
        %v1367 = vmax.f32 %v1348, 0.0
        %v1368 = vmax.f32 %v1234, 0.0
        %v1369 = vmax.f32 %v1350, 0.0
        %v1370 = vmax.f32 %v1237, 0.0
        %v1371 = vmax.f32 %v1353, 0.0
        %v1372 = vmax.f32 %v1239, 0.0
        %v1373 = vmax.f32 %v1355, 0.0
        %v1374 = vmax.f32 %v1242, 0.0
        %v1375 = vmax.f32 %v1358, 0.0
        %v1376 = vmax.f32 %v1244, 0.0
        %v1377 = vmax.f32 %v1360, 0.0
        %v1378 = vld [vmem:[%s413] sm:$0xff]
        %v1379 = vld [vmem:[%s413 + $0x8] sm:$0xff]
        %v1380 = vld [vmem:[%s413 + $0x10] sm:$0xff]
        %v1381 = vld [vmem:[%s413 + $0x18] sm:$0xff]
        %v1382 = vld [vmem:[%s413 + $0x20] sm:$0xff]
        %v1383 = vld [vmem:[%s413 + $0x28] sm:$0xff]
        %v1384 = vld [vmem:[%s413 + $0x30] sm:$0xff]
        %v1385 = vld [vmem:[%s413 + $0x38] sm:$0xff]
        %v1394 = vunpack.c.l.b16 %v1378
        %v1395 = vunpack.c.h.b16 %v1378
        %v1396 = vunpack.c.l.b16 %v1379
        %v1397 = vunpack.c.h.b16 %v1379
        %v1398 = vunpack.c.l.b16 %v1380
        %v1399 = vunpack.c.h.b16 %v1380
        %v1400 = vunpack.c.l.b16 %v1381
        %v1401 = vunpack.c.h.b16 %v1381
        %v1402 = vunpack.c.l.b16 %v1382
        %v1403 = vunpack.c.h.b16 %v1382
        %v1404 = vunpack.c.l.b16 %v1383
        %v1405 = vunpack.c.h.b16 %v1383
        %v1406 = vunpack.c.l.b16 %v1384
        %v1407 = vunpack.c.h.b16 %v1384
        %v1408 = vunpack.c.l.b16 %v1385
        %v1409 = vunpack.c.h.b16 %v1385
        %v1410 = vpack.c.b16 %v1396, %v1394
        %v1411 = vpack.c.b16 %v1397, %v1395
        %v1412 = vpack.c.b16 %v1400, %v1398
        %v1413 = vpack.c.b16 %v1401, %v1399
        %v1414 = vpack.c.b16 %v1404, %v1402
        %v1415 = vpack.c.b16 %v1405, %v1403
        %v1416 = vpack.c.b16 %v1408, %v1406
        %v1417 = vpack.c.b16 %v1409, %v1407
        %vm1426 = vcmask 523264
        %v1428 = vsel %vm1426, %v982, 0
        %v1431 = vsel %vm1426, %v983, 0
        %v1434 = vsel %vm1426, %v984, 0
        %v1437 = vsel %vm1426, %v985, 0
        %1439 = vmatpush.bf16.msra.mxu0 0
        %1440 = vmatpush.bf16.msra.mxu0 0
        %1441 = vmatpush.bf16.msra.mxu0 0
        %1442 = vmatpush.bf16.msra.mxu0 0
        %1443 = vmatpush.bf16.msra.mxu0 %v1416
        %1444 = vmatpush.bf16.msra.mxu0 %v1414
        %1445 = vmatpush.bf16.msra.mxu0 %v1412
        %1446 = vmatpush.bf16.msra.mxu0 %v1410
        %1447 = vmatmul.bf16.gmra.mxu0 %v1428
        %v1448 = vpop.f32.mrf.mxu0
        %v1449 = vadd.f32 0.0, %v1448
        %v1450 = vpop.f32.mrf.mxu0
        %v1451 = vadd.f32 0.0, %v1450
        %1452 = vmatmul.bf16.gmra.mxu0 %v1431
        %v1453 = vpop.f32.mrf.mxu0
        %v1454 = vadd.f32 0.0, %v1453
        %v1455 = vpop.f32.mrf.mxu0
        %v1456 = vadd.f32 0.0, %v1455
        %1457 = vmatmul.bf16.gmra.mxu0 %v1434
        %v1458 = vpop.f32.mrf.mxu0
        %v1459 = vadd.f32 0.0, %v1458
        %v1460 = vpop.f32.mrf.mxu0
        %v1461 = vadd.f32 0.0, %v1460
        %1462 = vmatmul.bf16.gmra.mxu0 %v1437
        %v1463 = vpop.f32.mrf.mxu0
        %v1464 = vadd.f32 0.0, %v1463
        %v1465 = vpop.f32.mrf.mxu0
        %v1466 = vadd.f32 0.0, %v1465
        %1467 = vdwg.mxu0
        %1468 = vmatpush.bf16.msra.mxu0 0
        %1469 = vmatpush.bf16.msra.mxu0 0
        %1470 = vmatpush.bf16.msra.mxu0 0
        %1471 = vmatpush.bf16.msra.mxu0 0
        %1472 = vmatpush.bf16.msra.mxu0 %v1417
        %1473 = vmatpush.bf16.msra.mxu0 %v1415
        %1474 = vmatpush.bf16.msra.mxu0 %v1413
        %1475 = vmatpush.bf16.msra.mxu0 %v1411
        %1476 = vmatmul.bf16.gmra.mxu0 %v1428
        %v1477 = vpop.f32.mrf.mxu0
        %v1478 = vadd.f32 0.0, %v1477
        %v1479 = vpop.f32.mrf.mxu0
        %v1480 = vadd.f32 0.0, %v1479
        %1481 = vmatmul.bf16.gmra.mxu0 %v1431
        %v1482 = vpop.f32.mrf.mxu0
        %v1483 = vadd.f32 0.0, %v1482
        %v1484 = vpop.f32.mrf.mxu0
        %v1485 = vadd.f32 0.0, %v1484
        %1486 = vmatmul.bf16.gmra.mxu0 %v1434
        %v1487 = vpop.f32.mrf.mxu0
        %v1488 = vadd.f32 0.0, %v1487
        %v1489 = vpop.f32.mrf.mxu0
        %v1490 = vadd.f32 0.0, %v1489
        %1491 = vmatmul.bf16.gmra.mxu0 %v1437
        %v1492 = vpop.f32.mrf.mxu0
        %v1493 = vadd.f32 0.0, %v1492
        %v1494 = vpop.f32.mrf.mxu0
        %v1495 = vadd.f32 0.0, %v1494
        %1496 = vdwg.mxu0
        %v1497 = vadd.f32 %v1362, %v1449
        %v1498 = vadd.f32 %v1363, %v1478
        %v1499 = vadd.f32 %v1364, %v1451
        %v1500 = vadd.f32 %v1365, %v1480
        %v1501 = vadd.f32 %v1366, %v1454
        %v1502 = vadd.f32 %v1367, %v1483
        %v1503 = vadd.f32 %v1368, %v1456
        %v1504 = vadd.f32 %v1369, %v1485
        %v1505 = vadd.f32 %v1370, %v1459
        %v1506 = vadd.f32 %v1371, %v1488
        %v1507 = vadd.f32 %v1372, %v1461
        %v1508 = vadd.f32 %v1373, %v1490
        %v1509 = vadd.f32 %v1374, %v1464
        %v1510 = vadd.f32 %v1375, %v1493
        %v1511 = vadd.f32 %v1376, %v1466
        %v1512 = vadd.f32 %v1377, %v1495
        %v1513 = vld [vmem:[%s7] sm:$0xf]
        %v1514 = vld [vmem:[%s7 + $0x4] sm:$0x3]
        %v1515 = vpack.c.bf16 %v1499, %v1497
        %v1516 = vpack.c.bf16 %v1500, %v1498
        %v1517 = vpack.c.bf16 %v1503, %v1501
        %v1518 = vpack.c.bf16 %v1504, %v1502
        %v1519 = vpack.c.bf16 %v1507, %v1505
        %v1520 = vpack.c.bf16 %v1508, %v1506
        %v1521 = vpack.c.bf16 %v1511, %v1509
        %v1522 = vpack.c.bf16 %v1512, %v1510
        %v1523 = vld [vmem:[%s8] sm:$0xff]
        %v1524 = vld [vmem:[%s8 + $0x8] sm:$0x7]
        %1526 = vset.pattern.permute.xlu0 0
        %1527 = vperm.xlu0 %1526, %v1523
        %v1528 = vpop.permute.xlu0 %1527
        %1531 = vset.pattern.permute.xlu0 0
        %1532 = vperm.xlu0 %1531, %v1524
        %v1533 = vpop.permute.xlu0 %1532
        %v1537 = vunpack.c.l.b16 %v1513
        %v1538 = vunpack.c.l.b16 %v1514
        %v1539 = vpack.c.b16 %v1538, %v1537
        %v1541 = vsel %vm1426, %v1539, 0
        %1543 = vmatpush.bf16.msra.mxu0 0
        %1544 = vmatpush.bf16.msra.mxu0 0
        %1545 = vmatpush.bf16.msra.mxu0 0
        %1546 = vmatpush.bf16.msra.mxu0 0
        %1547 = vmatpush.bf16.msra.mxu0 %v1521
        %1548 = vmatpush.bf16.msra.mxu0 %v1519
        %1549 = vmatpush.bf16.msra.mxu0 %v1517
        %1550 = vmatpush.bf16.msra.mxu0 %v1515
        %1551 = vmatmul.bf16.gmra.mxu0 %v1541
        %v1552 = vpop.f32.mrf.mxu0
        %v1553 = vadd.f32 %v1528, %v1552
        %v1554 = vpop.f32.mrf.mxu0
        %v1555 = vadd.f32 %v1533, %v1554
        %1556 = vdwg.mxu0
        %1557 = vmatpush.bf16.msra.mxu0 0
        %1558 = vmatpush.bf16.msra.mxu0 0
        %1559 = vmatpush.bf16.msra.mxu0 0
        %1560 = vmatpush.bf16.msra.mxu0 0
        %1561 = vmatpush.bf16.msra.mxu0 %v1522
        %1562 = vmatpush.bf16.msra.mxu0 %v1520
        %1563 = vmatpush.bf16.msra.mxu0 %v1518
        %1564 = vmatpush.bf16.msra.mxu0 %v1516
        %1565 = vmatmul.bf16.gmra.mxu0 %v1541
        %v1566 = vpop.f32.mrf.mxu0
        %v1567 = vadd.f32 %v1528, %v1566
        %v1568 = vpop.f32.mrf.mxu0
        %v1569 = vadd.f32 %v1533, %v1568
        %1570 = vdwg.mxu0
        %vm1571 = vcmask 1042432
        %v1572 = vsel %vm1571, %v1555, -inf
        %v1573 = vmax.f32 %v1553, %v1572
        %v1574 = vrot.slane %v1573, 4
        %v1575 = vmax.f32 %v1573, %v1574
        %v1576 = vrot.slane %v1575, 2
        %v1577 = vmax.f32 %v1575, %v1576
        %v1578 = vrot.slane %v1577, 1
        %v1579 = vmax.f32 %v1577, %v1578
        %v1580 = vsel %vm1571, %v1569, -inf
        %v1581 = vmax.f32 %v1567, %v1580
        %v1582 = vrot.slane %v1581, 4
        %v1583 = vmax.f32 %v1581, %v1582
        %v1584 = vrot.slane %v1583, 2
        %v1585 = vmax.f32 %v1583, %v1584
        %v1586 = vrot.slane %v1585, 1
        %v1587 = vmax.f32 %v1585, %v1586
        %v1588 = vsub.f32 %v1553, %v1579
        %v1589 = vsub.f32 %v1567, %v1587
        %v1590 = vsub.f32 %v1555, %v1579
        %v1591 = vsub.f32 %v1569, %v1587
        %v1592 = vmul.f32 %v1588, 1.442695
        %v1593 = vpow.pop %v1592
        %v1594 = vmul.f32 %v1589, 1.442695
        %v1595 = vpow.pop %v1594
        %v1596 = vmul.f32 %v1590, 1.442695
        %v1597 = vpow.pop %v1596
        %v1598 = vmul.f32 %v1591, 1.442695
        %v1599 = vpow.pop %v1598
        %v1600 = vsel %vm1571, %v1597, 0.0
        %v1601 = vadd.f32 %v1593, %v1600
        %v1602 = vrot.slane %v1601, 4
        %v1603 = vadd.f32 %v1601, %v1602
        %v1604 = vrot.slane %v1603, 2
        %v1605 = vadd.f32 %v1603, %v1604
        %v1606 = vrot.slane %v1605, 1
        %v1607 = vadd.f32 %v1605, %v1606
        %v1608 = vsel %vm1571, %v1599, 0.0
        %v1609 = vadd.f32 %v1595, %v1608
        %v1610 = vrot.slane %v1609, 4
        %v1611 = vadd.f32 %v1609, %v1610
        %v1612 = vrot.slane %v1611, 2
        %v1613 = vadd.f32 %v1611, %v1612
        %v1614 = vrot.slane %v1613, 1
        %v1615 = vadd.f32 %v1613, %v1614
        %v1616 = vrcp.pop %v1607
        %v1617 = vmul.f32 %v1607, %v1616
        %v1618 = vsub.f32 1.0, %v1617
        %v1619 = vmul.f32 %v1616, %v1618
        %v1620 = vadd.f32 %v1616, %v1619
        %vm1621 = vweird.f32 %v1607
        %vm1622 = vweird.f32 %v1616
        %vm1623 = vmor %vm1621, %vm1622
        %v1624 = vsel %vm1623, %v1616, %v1620
        %v1625 = vand.u32 2147483647, %v1607
        %vm1626 = vcmp.eq.f32.partialorder %v1625, 8.507059e+37
        %v1627 = vand.u32 %v1607, 2147483648
        %v1628 = vor.u32 1.1754944e-38, %v1627
        %v1629 = vsel %vm1626, %v1628, %v1624
        %v1630 = vmul.f32 %v1593, %v1629
        %v1631 = vrcp.pop %v1615
        %v1632 = vmul.f32 %v1615, %v1631
        %v1633 = vsub.f32 1.0, %v1632
        %v1634 = vmul.f32 %v1631, %v1633
        %v1635 = vadd.f32 %v1631, %v1634
        %vm1636 = vweird.f32 %v1615
        %vm1637 = vweird.f32 %v1631
        %vm1638 = vmor %vm1636, %vm1637
        %v1639 = vsel %vm1638, %v1631, %v1635
        %v1640 = vand.u32 2147483647, %v1615
        %vm1641 = vcmp.eq.f32.partialorder %v1640, 8.507059e+37
        %v1642 = vand.u32 %v1615, 2147483648
        %v1643 = vor.u32 1.1754944e-38, %v1642
        %v1644 = vsel %vm1641, %v1643, %v1639
        %v1645 = vmul.f32 %v1595, %v1644
        %v1646 = vmul.f32 %v1597, %v1629
        %v1647 = vmul.f32 %v1599, %v1644
        %1648 = vst [vmem:[%s423] sm:$0xff] %v1630
        %1649 = vst [vmem:[%s423 + $0x8] sm:$0xff] %v1645
        %1650 = vst [vmem:[%s423 + $0x10] sm:$0x7] %v1646
        %1651 = vst [vmem:[%s423 + $0x18] sm:$0x7] %v1647
        %s1652 = smul.u32 2, %s28
        %p1653 = scmp.lt.s32.totalorder %s27, 1
        %s1654 = scalar_select %p1653, %s27, 1
        %p1655 = scmp.lt.s32.totalorder %s1652, 1
        %s1656 = scalar_select %p1655, %s1652, 1
        %s1657 = smul.addr %s1654, 4
        %s1658 = sadd.s32 %s1656, %s1657
        %s1659 = smul.addr %s1658, 8
        %s1660 = scalar_lea.vmem %s9, %s1659
        // Predicated region
        $region61: #{tpu_custom_call.1} parent=55 // pred_check
          %p1661 = pneg %p261
        $region62: #{tpu_custom_call.1} parent=55 // pred_check_branch
          %1663 = sbr.rel (%p1661) target = $region64
        $region63: #{tpu_custom_call.1} parent=55 // pred_region
          %s1664 = smul.u32 2, %s28
        $region64: #{tpu_custom_call.1} parent=55 // pred_fallthru
          _
      $region56: #{tpu_custom_call.1} parent=5 // pred_fallthru
        _
      %p1665 = scmp.le.s32.totalorder 2, %s18
      // Predicated region
      $region65: #{tpu_custom_call.1} parent=5 // pred_check
        %p1666 = pneg %p1665
      $region66: #{tpu_custom_call.1} parent=5 // pred_check_branch
        %1668 = sbr.rel (%p1666) target = $region68
      $region67: #{tpu_custom_call.1} parent=5 // pred_region
        %s1669 = ssub.s32 %s18, 2
        // Predicated region
        $region69: #{tpu_custom_call.1} parent=67 // pred_check
          %p1670 = pneg %p267
        $region70: #{tpu_custom_call.1} parent=67 // pred_check_branch
          %1672 = sbr.rel (%p1670) target = $region72
        $region71: #{tpu_custom_call.1} parent=67 // pred_region
          %s1673 = smul.u32 2, %s30
          %p1674 = scmp.lt.s32.totalorder %s29, 1
          %s1675 = scalar_select %p1674, %s29, 1
          %p1676 = scmp.lt.s32.totalorder %s1673, 1
          %s1677 = scalar_select %p1676, %s1673, 1
          %s1678 = smul.addr %s1675, 4
          %s1679 = sadd.s32 %s1677, %s1678
          %s1680 = smul.addr %s1679, 8
          %s1681 = scalar_lea.vmem %s9, %s1680
        $region72: #{tpu_custom_call.1} parent=67 // pred_fallthru
          _
      $region68: #{tpu_custom_call.1} parent=5 // pred_fallthru
        _
    $region6: #{tpu_custom_call.1} parent=1 // loop_footer
      %s22 = sadd.s32 1, %s18
    $region7: #{tpu_custom_call.1} parent=1 // loop_footer_branch
      %17 = sbr.rel target = $region3
    $region8: #{tpu_custom_call.1} parent=1 // loop_exit
      _
    %1682 = vsyncpa [#allocation3], 1
    %s1683 = scalar_lea.sflag [#allocation3], 1
    %1684 = vsyncpa %s1683, 1

</llo_original>
